<compile_context>
chip_gen: v6e
topology: v6e:2x2x1
jax: 0.10.0
libtpu: 0.0.40
codegen_flags: <defaults>
</compile_context>

<pallas_src>
import functools

import jax
import jax.numpy as jnp
from jax import lax
from jax.experimental import pallas as pl
from jax.experimental.pallas import tpu as pltpu


def _group_kernel(pts_ref, xyz_ref, nbh_ref, ctr_ref,
                  dmat_ref, selc_ref, sel_ref, *, num_group, group_size):
    """One batch element per grid step.

    pts_ref : (3, N)         points, channel-major (lanes = points)
    xyz_ref : (N, 3)         same points, row-major (dynamic row reads in FPS)
    nbh_ref : (3, M*G)       output: re-centered neighborhoods, lane-dense
    ctr_ref : (G, 3)         output: FPS centers
    dmat_ref: (G, N)   f32   scratch: center->point squared-distance matrix
    selc_ref: (G, N)   f32   scratch: one-hot rows of the FPS-selected centers
    sel_ref : (M*G, N) f32   scratch: gather-and-recenter matrix for final matmul
    """
    G, M = num_group, group_size
    _, N = pts_ref.shape
    big = jnp.float32(1e10)

    pts = pts_ref[...].astype(jnp.float32)                        # (3, N)
    p0 = pts[0:1, :]
    p1 = pts[1:2, :]
    p2 = pts[2:3, :]
    pnorm = p0 * p0 + p1 * p1 + p2 * p2                           # (1, N)
    iota_n = lax.broadcasted_iota(jnp.int32, (1, N), 1)           # (1, N)

    # ------------- farthest point sampling (starts at point 0) -------------
    # Each iteration also fills row i of the kNN distance matrix and the
    # center one-hot matrix, so no second distance pass is needed.
    def fps_body(i, carry):
        dist, far = carry
        crow = xyz_ref[pl.ds(far, 1), :].astype(jnp.float32)      # (1, 3) dyn row
        ctr_ref[pl.ds(i, 1), :] = crow.astype(ctr_ref.dtype)      # center i
        selc_ref[pl.ds(i, 1), :] = (iota_n == far).astype(jnp.float32)
        c0 = crow[:, 0:1]
        c1 = crow[:, 1:2]
        c2 = crow[:, 2:3]
        cdotp = c0 * p0 + c1 * p1 + c2 * p2                       # (1, N) lane FMAs
        cnorm = c0 * c0 + c1 * c1 + c2 * c2                       # (1, 1)
        d = pnorm - 2.0 * cdotp + cnorm                           # (1, N)
        dmat_ref[pl.ds(i, 1), :] = d                              # kNN dist row i
        dist = jnp.minimum(dist, d)
        mx = jnp.max(dist)
        far_new = jnp.min(jnp.where(dist == mx, iota_n, N)).astype(jnp.int32)
        return dist, far_new

    dist0 = jnp.full((1, N), big, jnp.float32)
    _ = lax.fori_loop(0, G, fps_body, (dist0, jnp.int32(0)),
                      unroll=bool(G <= 16))

    selC = selc_ref[...]                                          # (G, N)
    iota_gn = lax.broadcasted_iota(jnp.int32, (G, N), 1)          # (G, N)

    # ------------- kNN top-M selection (fully unrolled, fixed M) -----------
    for m in range(M):
        dmat = dmat_ref[...]
        minval = jnp.min(dmat, axis=1, keepdims=True)             # (G, 1)
        idx_col = jnp.min(jnp.where(dmat == minval, iota_gn, N),
                          axis=1, keepdims=True)                  # (G, 1)
        sel_bool = iota_gn == idx_col                             # (G, N) one-hot
        # Row (m*G + g): +1 at the m-th neighbor of group g, -1 at its center.
        # The final matmul then yields xyz[knn] - xyz[center] directly.
        sel_ref[pl.ds(m * G, G), :] = sel_bool.astype(jnp.float32) - selC
        dmat_ref[...] = jnp.where(sel_bool, big, dmat)            # mask picked point

    # ------------- single MXU gather + re-center, lane-dense store ---------
    nbh = lax.dot_general(pts, sel_ref[...], (((1,), (1,)), ((), ())),
                          preferred_element_type=jnp.float32)     # (3, M*G)
    nbh_ref[...] = nbh.astype(nbh_ref.dtype)


def group_pallas(data, num_group, group_size):
    """data: (B, N, 3) float32 -> (neighborhood (B,G,M,3), center (B,G,3))."""
    B, N, C = data.shape
    assert C == 3, "only xyz input supported"
    # TODO(synk): C > 3 (xyz + rgb) branch of Group.forward is not implemented.
    G, M = num_group, group_size

    xyz = data[..., :3].astype(jnp.float32)                       # (B, N, 3)
    pts = jnp.transpose(xyz, (0, 2, 1))                           # (B, 3, N)
    kernel = functools.partial(_group_kernel, num_group=G, group_size=M)

    nbh_flat, center = pl.pallas_call(
        kernel,
        grid=(B,),
        in_specs=[pl.BlockSpec((None, 3, N), lambda b: (b, 0, 0)),
                  pl.BlockSpec((None, N, 3), lambda b: (b, 0, 0))],
        out_specs=(pl.BlockSpec((None, 3, M * G), lambda b: (b, 0, 0)),
                   pl.BlockSpec((None, G, 3), lambda b: (b, 0, 0))),
        out_shape=(jax.ShapeDtypeStruct((B, 3, M * G), jnp.float32),
                   jax.ShapeDtypeStruct((B, G, 3), jnp.float32)),
        scratch_shapes=[pltpu.VMEM((G, N), jnp.float32),       # dmat
                        pltpu.VMEM((G, N), jnp.float32),       # center one-hots
                        pltpu.VMEM((M * G, N), jnp.float32)],  # gather matrix
        compiler_params=pltpu.CompilerParams(
            dimension_semantics=("parallel",)),
    )(pts, xyz)

    # (B, 3, M*G) -> (B, 3, M, G) -> (B, G, M, 3)
    neighborhood = jnp.transpose(nbh_flat.reshape(B, 3, M, G), (0, 3, 2, 1))
    return neighborhood, center


def group_reference(data, num_group, group_size):
    """Pure-JAX reference with identical algorithmic choices (FPS starts at 0,
    ties broken by smallest index, same distance formulation) for validation."""
    def one(xyz):                                                 # (N, 3)
        N = xyz.shape[0]
        pts = xyz.T                                               # (3, N)
        p0, p1, p2 = pts[0:1, :], pts[1:2, :], pts[2:3, :]
        pnorm = p0 * p0 + p1 * p1 + p2 * p2                       # (1, N)

        def fps_body(i, carry):
            dist, far, ctrs = carry
            crow = lax.dynamic_slice(xyz, (far, 0), (1, 3))       # (1, 3)
            ctrs = lax.dynamic_update_slice(ctrs, crow, (i, 0))
            c0, c1, c2 = crow[:, 0:1], crow[:, 1:2], crow[:, 2:3]
            cdotp = c0 * p0 + c1 * p1 + c2 * p2
            cnorm = c0 * c0 + c1 * c1 + c2 * c2
            d = pnorm - 2.0 * cdotp + cnorm
            dist = jnp.minimum(dist, d)
            far = jnp.argmax(dist[0]).astype(jnp.int32)
            return dist, far, ctrs

        dist0 = jnp.full((1, N), 1e10, jnp.float32)
        _, _, center = lax.fori_loop(
            0, num_group, fps_body,
            (dist0, jnp.int32(0), jnp.zeros((num_group, 3), jnp.float32)))
        cx, cy, cz = center[:, 0:1], center[:, 1:2], center[:, 2:3]
        cdotp = cx * p0 + cy * p1 + cz * p2                       # (G, N)
        cnorm = cx * cx + cy * cy + cz * cz                       # (G, 1)
        dmat = pnorm - 2.0 * cdotp + cnorm                        # (G, N)
        idx = jnp.argsort(dmat, axis=1)[:, :group_size]           # stable sort
        nbh = xyz[idx] - center[:, None, :]                       # (G, M, 3)
        return nbh, center

    return jax.vmap(one)(data[:, :, :3].astype(jnp.float32))


if __name__ == "__main__":
    B, N = 2, 128
    num_group, group_size = 8, 16

    key = jax.random.PRNGKey(0)
    data = jax.random.normal(key, (B, N, 3), dtype=jnp.float32)

    neighborhood, center = group_pallas(data, num_group, group_size)
    jax.block_until_ready((neighborhood, center))

    nbh_exp, ctr_exp = group_reference(data, num_group, group_size)

    assert neighborhood.shape == (B, num_group, group_size, 3)
    assert center.shape == (B, num_group, 3)
    assert jnp.allclose(center, ctr_exp, atol=1e-3), "center mismatch"
    assert jnp.allclose(neighborhood, nbh_exp, atol=1e-3), "neighborhood mismatch"

    print("KERNEL_OK")
</pallas_src>

<mosaic_0001>
module attributes {stable_mosaic.version = 11 : i64} {
  func.func @_group_kernel(%arg0: i32, %arg1: memref<1x3x128xf32, #tpu.memory_space<vmem>>, %arg2: memref<1x128x3xf32, #tpu.memory_space<vmem>>, %arg3: memref<1x3x128xf32, #tpu.memory_space<vmem>>, %arg4: memref<1x8x3xf32, #tpu.memory_space<vmem>>, %arg5: memref<8x128xf32, #tpu.memory_space<vmem>>, %arg6: memref<8x128xf32, #tpu.memory_space<vmem>>, %arg7: memref<128x128xf32, #tpu.memory_space<vmem>>) attributes {dimension_semantics = [#tpu.dimension_semantics<parallel>], iteration_bounds = array<i64: 2>, scalar_prefetch = 0 : i64, scratch_operands = 3 : i64, tpu.core_type = #tpu.core_type<tc>, window_params = [{transform_indices = @transform_0, window_bounds = array<i64: 1, 3, 128>}, {transform_indices = @transform_1, window_bounds = array<i64: 1, 128, 3>}, {transform_indices = @transform_2, window_bounds = array<i64: 1, 3, 128>}, {transform_indices = @transform_3, window_bounds = array<i64: 1, 8, 3>}]} {
    %c0 = arith.constant 0 : index
    %c0_0 = arith.constant 0 : index
    %c0_1 = arith.constant 0 : index
    %0 = vector.load %arg1[%c0, %c0_0, %c0_1] : memref<1x3x128xf32, #tpu.memory_space<vmem>>, vector<1x3x128xf32>
    %1 = vector.shape_cast %0 : vector<1x3x128xf32> to vector<3x128xf32>
    %2 = vector.extract_strided_slice %1 {offsets = [0, 0], sizes = [1, 128], strides = [1, 1]} : vector<3x128xf32> to vector<1x128xf32>
    %3 = vector.extract_strided_slice %1 {offsets = [1, 0], sizes = [1, 128], strides = [1, 1]} : vector<3x128xf32> to vector<1x128xf32>
    %4 = vector.extract_strided_slice %1 {offsets = [2, 0], sizes = [1, 128], strides = [1, 1]} : vector<3x128xf32> to vector<1x128xf32>
    %5 = arith.mulf %2, %2 : vector<1x128xf32>
    %6 = arith.mulf %3, %3 : vector<1x128xf32>
    %7 = arith.addf %5, %6 : vector<1x128xf32>
    %8 = arith.mulf %4, %4 : vector<1x128xf32>
    %9 = arith.addf %7, %8 : vector<1x128xf32>
    %10 = tpu.iota {dimensions = array<i32: 1>} : vector<1x128xi32>
    %cst = arith.constant 1.000000e+10 : f32
    %11 = vector.broadcast %cst : f32 to vector<1x128xf32>
    %c0_i32 = arith.constant 0 : i32
    %c0_i32_2 = arith.constant 0 : i32
    %c0_3 = arith.constant 0 : index
    %12 = arith.index_cast %c0_i32 : i32 to index
    %c0_4 = arith.constant 0 : index
    %13 = vector.load %arg2[%c0_3, %12, %c0_4] : memref<1x128x3xf32, #tpu.memory_space<vmem>>, vector<1x1x3xf32>
    %14 = vector.shape_cast %13 : vector<1x1x3xf32> to vector<1x3xf32>
    %c0_5 = arith.constant 0 : index
    %15 = arith.index_cast %c0_i32_2 : i32 to index
    %c0_6 = arith.constant 0 : index
    %16 = vector.load %arg4[%c0_5, %15, %c0_6] : memref<1x8x3xf32, #tpu.memory_space<vmem>>, vector<1x1x3xf32>
    %17 = vector.shape_cast %16 : vector<1x1x3xf32> to vector<1x3xf32>
    %18 = vector.shape_cast %14 : vector<1x3xf32> to vector<1x1x3xf32>
    tpu.vector_store %arg4[%c0_5, %15, %c0_6], %18 {strides = array<i32>} : memref<1x8x3xf32, #tpu.memory_space<vmem>>, vector<1x1x3xf32>,
    %19 = vector.broadcast %c0_i32 : i32 to vector<1x128xi32>
    %20 = arith.cmpi eq, %10, %19 : vector<1x128xi32>
    %21 = arith.extui %20 : vector<1x128xi1> to vector<1x128xi32>
    %22 = arith.sitofp %21 : vector<1x128xi32> to vector<1x128xf32>
    %23 = arith.index_cast %c0_i32_2 : i32 to index
    %c0_7 = arith.constant 0 : index
    %24 = vector.load %arg6[%23, %c0_7] : memref<8x128xf32, #tpu.memory_space<vmem>>, vector<1x128xf32>
    tpu.vector_store %arg6[%23, %c0_7], %22 {strides = array<i32>} : memref<8x128xf32, #tpu.memory_space<vmem>>, vector<1x128xf32>,
    %25 = vector.extract_strided_slice %14 {offsets = [0, 0], sizes = [1, 1], strides = [1, 1]} : vector<1x3xf32> to vector<1x1xf32>
    %26 = vector.extract_strided_slice %14 {offsets = [0, 1], sizes = [1, 1], strides = [1, 1]} : vector<1x3xf32> to vector<1x1xf32>
    %27 = vector.extract_strided_slice %14 {offsets = [0, 2], sizes = [1, 1], strides = [1, 1]} : vector<1x3xf32> to vector<1x1xf32>
    %28 = vector.broadcast %25 : vector<1x1xf32> to vector<1x128xf32>
    %29 = arith.mulf %28, %2 : vector<1x128xf32>
    %30 = vector.broadcast %26 : vector<1x1xf32> to vector<1x128xf32>
    %31 = arith.mulf %30, %3 : vector<1x128xf32>
    %32 = arith.addf %29, %31 : vector<1x128xf32>
    %33 = vector.broadcast %27 : vector<1x1xf32> to vector<1x128xf32>
    %34 = arith.mulf %33, %4 : vector<1x128xf32>
    %35 = arith.addf %32, %34 : vector<1x128xf32>
    %36 = arith.mulf %25, %25 : vector<1x1xf32>
    %37 = arith.mulf %26, %26 : vector<1x1xf32>
    %38 = arith.addf %36, %37 : vector<1x1xf32>
    %39 = arith.mulf %27, %27 : vector<1x1xf32>
    %40 = arith.addf %38, %39 : vector<1x1xf32>
    %cst_8 = arith.constant 2.000000e+00 : f32
    %41 = vector.broadcast %cst_8 : f32 to vector<1x128xf32>
    %42 = arith.mulf %41, %35 : vector<1x128xf32>
    %43 = arith.subf %9, %42 : vector<1x128xf32>
    %44 = vector.broadcast %40 : vector<1x1xf32> to vector<1x128xf32>
    %45 = arith.addf %43, %44 : vector<1x128xf32>
    %46 = arith.index_cast %c0_i32_2 : i32 to index
    %c0_9 = arith.constant 0 : index
    %47 = vector.load %arg5[%46, %c0_9] : memref<8x128xf32, #tpu.memory_space<vmem>>, vector<1x128xf32>
    tpu.vector_store %arg5[%46, %c0_9], %45 {strides = array<i32>} : memref<8x128xf32, #tpu.memory_space<vmem>>, vector<1x128xf32>,
    %48 = arith.minimumf %11, %45 : vector<1x128xf32>
    %49 = vector.shape_cast %48 : vector<1x128xf32> to vector<1x1x128xf32>
    %cst_10 = arith.constant dense<0xFF800000> : vector<1xf32>
    %50 = vector.multi_reduction <maximumf>, %49, %cst_10 [1, 2] : vector<1x1x128xf32> to vector<1xf32>
    %51 = vector.shape_cast %50 : vector<1xf32> to vector<1x1x1xf32>
    %52 = vector.extract %51[0, 0, 0] : f32 from vector<1x1x1xf32>
    %53 = vector.broadcast %52 : f32 to vector<1x128xf32>
    %54 = arith.cmpf oeq, %48, %53 : vector<1x128xf32>
    %c128_i32 = arith.constant 128 : i32
    %55 = vector.broadcast %c128_i32 : i32 to vector<1x128xi32>
    %56 = arith.select %54, %10, %55 : vector<1x128xi1>, vector<1x128xi32>
    %57 = vector.shape_cast %56 : vector<1x128xi32> to vector<1x1x128xi32>
    %cst_11 = arith.constant dense<2147483647> : vector<1xi32>
    %58 = vector.multi_reduction <minsi>, %57, %cst_11 [1, 2] : vector<1x1x128xi32> to vector<1xi32>
    %59 = vector.shape_cast %58 : vector<1xi32> to vector<1x1x1xi32>
    %60 = vector.extract %59[0, 0, 0] : i32 from vector<1x1x1xi32>
    %c1_i32 = arith.constant 1 : i32
    %c0_12 = arith.constant 0 : index
    %61 = arith.index_cast %60 : i32 to index
    %c0_13 = arith.constant 0 : index
    %62 = vector.load %arg2[%c0_12, %61, %c0_13] : memref<1x128x3xf32, #tpu.memory_space<vmem>>, vector<1x1x3xf32>
    %63 = vector.shape_cast %62 : vector<1x1x3xf32> to vector<1x3xf32>
    %c0_14 = arith.constant 0 : index
    %64 = arith.index_cast %c1_i32 : i32 to index
    %c0_15 = arith.constant 0 : index
    %65 = vector.load %arg4[%c0_14, %64, %c0_15] : memref<1x8x3xf32, #tpu.memory_space<vmem>>, vector<1x1x3xf32>
    %66 = vector.shape_cast %65 : vector<1x1x3xf32> to vector<1x3xf32>
    %67 = vector.shape_cast %63 : vector<1x3xf32> to vector<1x1x3xf32>
    tpu.vector_store %arg4[%c0_14, %64, %c0_15], %67 {strides = array<i32>} : memref<1x8x3xf32, #tpu.memory_space<vmem>>, vector<1x1x3xf32>,
    %68 = vector.broadcast %60 : i32 to vector<1x128xi32>
    %69 = arith.cmpi eq, %10, %68 : vector<1x128xi32>
    %70 = arith.extui %69 : vector<1x128xi1> to vector<1x128xi32>
    %71 = arith.sitofp %70 : vector<1x128xi32> to vector<1x128xf32>
    %72 = arith.index_cast %c1_i32 : i32 to index
    %c0_16 = arith.constant 0 : index
    %73 = vector.load %arg6[%72, %c0_16] : memref<8x128xf32, #tpu.memory_space<vmem>>, vector<1x128xf32>
    tpu.vector_store %arg6[%72, %c0_16], %71 {strides = array<i32>} : memref<8x128xf32, #tpu.memory_space<vmem>>, vector<1x128xf32>,
    %74 = vector.extract_strided_slice %63 {offsets = [0, 0], sizes = [1, 1], strides = [1, 1]} : vector<1x3xf32> to vector<1x1xf32>
    %75 = vector.extract_strided_slice %63 {offsets = [0, 1], sizes = [1, 1], strides = [1, 1]} : vector<1x3xf32> to vector<1x1xf32>
    %76 = vector.extract_strided_slice %63 {offsets = [0, 2], sizes = [1, 1], strides = [1, 1]} : vector<1x3xf32> to vector<1x1xf32>
    %77 = vector.broadcast %74 : vector<1x1xf32> to vector<1x128xf32>
    %78 = arith.mulf %77, %2 : vector<1x128xf32>
    %79 = vector.broadcast %75 : vector<1x1xf32> to vector<1x128xf32>
    %80 = arith.mulf %79, %3 : vector<1x128xf32>
    %81 = arith.addf %78, %80 : vector<1x128xf32>
    %82 = vector.broadcast %76 : vector<1x1xf32> to vector<1x128xf32>
    %83 = arith.mulf %82, %4 : vector<1x128xf32>
    %84 = arith.addf %81, %83 : vector<1x128xf32>
    %85 = arith.mulf %74, %74 : vector<1x1xf32>
    %86 = arith.mulf %75, %75 : vector<1x1xf32>
    %87 = arith.addf %85, %86 : vector<1x1xf32>
    %88 = arith.mulf %76, %76 : vector<1x1xf32>
    %89 = arith.addf %87, %88 : vector<1x1xf32>
    %cst_17 = arith.constant 2.000000e+00 : f32
    %90 = vector.broadcast %cst_17 : f32 to vector<1x128xf32>
    %91 = arith.mulf %90, %84 : vector<1x128xf32>
    %92 = arith.subf %9, %91 : vector<1x128xf32>
    %93 = vector.broadcast %89 : vector<1x1xf32> to vector<1x128xf32>
    %94 = arith.addf %92, %93 : vector<1x128xf32>
    %95 = arith.index_cast %c1_i32 : i32 to index
    %c0_18 = arith.constant 0 : index
    %96 = vector.load %arg5[%95, %c0_18] : memref<8x128xf32, #tpu.memory_space<vmem>>, vector<1x128xf32>
    tpu.vector_store %arg5[%95, %c0_18], %94 {strides = array<i32>} : memref<8x128xf32, #tpu.memory_space<vmem>>, vector<1x128xf32>,
    %97 = arith.minimumf %48, %94 : vector<1x128xf32>
    %98 = vector.shape_cast %97 : vector<1x128xf32> to vector<1x1x128xf32>
    %cst_19 = arith.constant dense<0xFF800000> : vector<1xf32>
    %99 = vector.multi_reduction <maximumf>, %98, %cst_19 [1, 2] : vector<1x1x128xf32> to vector<1xf32>
    %100 = vector.shape_cast %99 : vector<1xf32> to vector<1x1x1xf32>
    %101 = vector.extract %100[0, 0, 0] : f32 from vector<1x1x1xf32>
    %102 = vector.broadcast %101 : f32 to vector<1x128xf32>
    %103 = arith.cmpf oeq, %97, %102 : vector<1x128xf32>
    %c128_i32_20 = arith.constant 128 : i32
    %104 = vector.broadcast %c128_i32_20 : i32 to vector<1x128xi32>
    %105 = arith.select %103, %10, %104 : vector<1x128xi1>, vector<1x128xi32>
    %106 = vector.shape_cast %105 : vector<1x128xi32> to vector<1x1x128xi32>
    %cst_21 = arith.constant dense<2147483647> : vector<1xi32>
    %107 = vector.multi_reduction <minsi>, %106, %cst_21 [1, 2] : vector<1x1x128xi32> to vector<1xi32>
    %108 = vector.shape_cast %107 : vector<1xi32> to vector<1x1x1xi32>
    %109 = vector.extract %108[0, 0, 0] : i32 from vector<1x1x1xi32>
    %c2_i32 = arith.constant 2 : i32
    %c0_22 = arith.constant 0 : index
    %110 = arith.index_cast %109 : i32 to index
    %c0_23 = arith.constant 0 : index
    %111 = vector.load %arg2[%c0_22, %110, %c0_23] : memref<1x128x3xf32, #tpu.memory_space<vmem>>, vector<1x1x3xf32>
    %112 = vector.shape_cast %111 : vector<1x1x3xf32> to vector<1x3xf32>
    %c0_24 = arith.constant 0 : index
    %113 = arith.index_cast %c2_i32 : i32 to index
    %c0_25 = arith.constant 0 : index
    %114 = vector.load %arg4[%c0_24, %113, %c0_25] : memref<1x8x3xf32, #tpu.memory_space<vmem>>, vector<1x1x3xf32>
    %115 = vector.shape_cast %114 : vector<1x1x3xf32> to vector<1x3xf32>
    %116 = vector.shape_cast %112 : vector<1x3xf32> to vector<1x1x3xf32>
    tpu.vector_store %arg4[%c0_24, %113, %c0_25], %116 {strides = array<i32>} : memref<1x8x3xf32, #tpu.memory_space<vmem>>, vector<1x1x3xf32>,
    %117 = vector.broadcast %109 : i32 to vector<1x128xi32>
    %118 = arith.cmpi eq, %10, %117 : vector<1x128xi32>
    %119 = arith.extui %118 : vector<1x128xi1> to vector<1x128xi32>
    %120 = arith.sitofp %119 : vector<1x128xi32> to vector<1x128xf32>
    %121 = arith.index_cast %c2_i32 : i32 to index
    %c0_26 = arith.constant 0 : index
    %122 = vector.load %arg6[%121, %c0_26] : memref<8x128xf32, #tpu.memory_space<vmem>>, vector<1x128xf32>
    tpu.vector_store %arg6[%121, %c0_26], %120 {strides = array<i32>} : memref<8x128xf32, #tpu.memory_space<vmem>>, vector<1x128xf32>,
    %123 = vector.extract_strided_slice %112 {offsets = [0, 0], sizes = [1, 1], strides = [1, 1]} : vector<1x3xf32> to vector<1x1xf32>
    %124 = vector.extract_strided_slice %112 {offsets = [0, 1], sizes = [1, 1], strides = [1, 1]} : vector<1x3xf32> to vector<1x1xf32>
    %125 = vector.extract_strided_slice %112 {offsets = [0, 2], sizes = [1, 1], strides = [1, 1]} : vector<1x3xf32> to vector<1x1xf32>
    %126 = vector.broadcast %123 : vector<1x1xf32> to vector<1x128xf32>
    %127 = arith.mulf %126, %2 : vector<1x128xf32>
    %128 = vector.broadcast %124 : vector<1x1xf32> to vector<1x128xf32>
    %129 = arith.mulf %128, %3 : vector<1x128xf32>
    %130 = arith.addf %127, %129 : vector<1x128xf32>
    %131 = vector.broadcast %125 : vector<1x1xf32> to vector<1x128xf32>
    %132 = arith.mulf %131, %4 : vector<1x128xf32>
    %133 = arith.addf %130, %132 : vector<1x128xf32>
    %134 = arith.mulf %123, %123 : vector<1x1xf32>
    %135 = arith.mulf %124, %124 : vector<1x1xf32>
    %136 = arith.addf %134, %135 : vector<1x1xf32>
    %137 = arith.mulf %125, %125 : vector<1x1xf32>
    %138 = arith.addf %136, %137 : vector<1x1xf32>
    %cst_27 = arith.constant 2.000000e+00 : f32
    %139 = vector.broadcast %cst_27 : f32 to vector<1x128xf32>
    %140 = arith.mulf %139, %133 : vector<1x128xf32>
    %141 = arith.subf %9, %140 : vector<1x128xf32>
    %142 = vector.broadcast %138 : vector<1x1xf32> to vector<1x128xf32>
    %143 = arith.addf %141, %142 : vector<1x128xf32>
    %144 = arith.index_cast %c2_i32 : i32 to index
    %c0_28 = arith.constant 0 : index
    %145 = vector.load %arg5[%144, %c0_28] : memref<8x128xf32, #tpu.memory_space<vmem>>, vector<1x128xf32>
    tpu.vector_store %arg5[%144, %c0_28], %143 {strides = array<i32>} : memref<8x128xf32, #tpu.memory_space<vmem>>, vector<1x128xf32>,
    %146 = arith.minimumf %97, %143 : vector<1x128xf32>
    %147 = vector.shape_cast %146 : vector<1x128xf32> to vector<1x1x128xf32>
    %cst_29 = arith.constant dense<0xFF800000> : vector<1xf32>
    %148 = vector.multi_reduction <maximumf>, %147, %cst_29 [1, 2] : vector<1x1x128xf32> to vector<1xf32>
    %149 = vector.shape_cast %148 : vector<1xf32> to vector<1x1x1xf32>
    %150 = vector.extract %149[0, 0, 0] : f32 from vector<1x1x1xf32>
    %151 = vector.broadcast %150 : f32 to vector<1x128xf32>
    %152 = arith.cmpf oeq, %146, %151 : vector<1x128xf32>
    %c128_i32_30 = arith.constant 128 : i32
    %153 = vector.broadcast %c128_i32_30 : i32 to vector<1x128xi32>
    %154 = arith.select %152, %10, %153 : vector<1x128xi1>, vector<1x128xi32>
    %155 = vector.shape_cast %154 : vector<1x128xi32> to vector<1x1x128xi32>
    %cst_31 = arith.constant dense<2147483647> : vector<1xi32>
    %156 = vector.multi_reduction <minsi>, %155, %cst_31 [1, 2] : vector<1x1x128xi32> to vector<1xi32>
    %157 = vector.shape_cast %156 : vector<1xi32> to vector<1x1x1xi32>
    %158 = vector.extract %157[0, 0, 0] : i32 from vector<1x1x1xi32>
    %c3_i32 = arith.constant 3 : i32
    %c0_32 = arith.constant 0 : index
    %159 = arith.index_cast %158 : i32 to index
    %c0_33 = arith.constant 0 : index
    %160 = vector.load %arg2[%c0_32, %159, %c0_33] : memref<1x128x3xf32, #tpu.memory_space<vmem>>, vector<1x1x3xf32>
    %161 = vector.shape_cast %160 : vector<1x1x3xf32> to vector<1x3xf32>
    %c0_34 = arith.constant 0 : index
    %162 = arith.index_cast %c3_i32 : i32 to index
    %c0_35 = arith.constant 0 : index
    %163 = vector.load %arg4[%c0_34, %162, %c0_35] : memref<1x8x3xf32, #tpu.memory_space<vmem>>, vector<1x1x3xf32>
    %164 = vector.shape_cast %163 : vector<1x1x3xf32> to vector<1x3xf32>
    %165 = vector.shape_cast %161 : vector<1x3xf32> to vector<1x1x3xf32>
    tpu.vector_store %arg4[%c0_34, %162, %c0_35], %165 {strides = array<i32>} : memref<1x8x3xf32, #tpu.memory_space<vmem>>, vector<1x1x3xf32>,
    %166 = vector.broadcast %158 : i32 to vector<1x128xi32>
    %167 = arith.cmpi eq, %10, %166 : vector<1x128xi32>
    %168 = arith.extui %167 : vector<1x128xi1> to vector<1x128xi32>
    %169 = arith.sitofp %168 : vector<1x128xi32> to vector<1x128xf32>
    %170 = arith.index_cast %c3_i32 : i32 to index
    %c0_36 = arith.constant 0 : index
    %171 = vector.load %arg6[%170, %c0_36] : memref<8x128xf32, #tpu.memory_space<vmem>>, vector<1x128xf32>
    tpu.vector_store %arg6[%170, %c0_36], %169 {strides = array<i32>} : memref<8x128xf32, #tpu.memory_space<vmem>>, vector<1x128xf32>,
    %172 = vector.extract_strided_slice %161 {offsets = [0, 0], sizes = [1, 1], strides = [1, 1]} : vector<1x3xf32> to vector<1x1xf32>
    %173 = vector.extract_strided_slice %161 {offsets = [0, 1], sizes = [1, 1], strides = [1, 1]} : vector<1x3xf32> to vector<1x1xf32>
    %174 = vector.extract_strided_slice %161 {offsets = [0, 2], sizes = [1, 1], strides = [1, 1]} : vector<1x3xf32> to vector<1x1xf32>
    %175 = vector.broadcast %172 : vector<1x1xf32> to vector<1x128xf32>
    %176 = arith.mulf %175, %2 : vector<1x128xf32>
    %177 = vector.broadcast %173 : vector<1x1xf32> to vector<1x128xf32>
    %178 = arith.mulf %177, %3 : vector<1x128xf32>
    %179 = arith.addf %176, %178 : vector<1x128xf32>
    %180 = vector.broadcast %174 : vector<1x1xf32> to vector<1x128xf32>
    %181 = arith.mulf %180, %4 : vector<1x128xf32>
    %182 = arith.addf %179, %181 : vector<1x128xf32>
    %183 = arith.mulf %172, %172 : vector<1x1xf32>
    %184 = arith.mulf %173, %173 : vector<1x1xf32>
    %185 = arith.addf %183, %184 : vector<1x1xf32>
    %186 = arith.mulf %174, %174 : vector<1x1xf32>
    %187 = arith.addf %185, %186 : vector<1x1xf32>
    %cst_37 = arith.constant 2.000000e+00 : f32
    %188 = vector.broadcast %cst_37 : f32 to vector<1x128xf32>
    %189 = arith.mulf %188, %182 : vector<1x128xf32>
    %190 = arith.subf %9, %189 : vector<1x128xf32>
    %191 = vector.broadcast %187 : vector<1x1xf32> to vector<1x128xf32>
    %192 = arith.addf %190, %191 : vector<1x128xf32>
    %193 = arith.index_cast %c3_i32 : i32 to index
    %c0_38 = arith.constant 0 : index
    %194 = vector.load %arg5[%193, %c0_38] : memref<8x128xf32, #tpu.memory_space<vmem>>, vector<1x128xf32>
    tpu.vector_store %arg5[%193, %c0_38], %192 {strides = array<i32>} : memref<8x128xf32, #tpu.memory_space<vmem>>, vector<1x128xf32>,
    %195 = arith.minimumf %146, %192 : vector<1x128xf32>
    %196 = vector.shape_cast %195 : vector<1x128xf32> to vector<1x1x128xf32>
    %cst_39 = arith.constant dense<0xFF800000> : vector<1xf32>
    %197 = vector.multi_reduction <maximumf>, %196, %cst_39 [1, 2] : vector<1x1x128xf32> to vector<1xf32>
    %198 = vector.shape_cast %197 : vector<1xf32> to vector<1x1x1xf32>
    %199 = vector.extract %198[0, 0, 0] : f32 from vector<1x1x1xf32>
    %200 = vector.broadcast %199 : f32 to vector<1x128xf32>
    %201 = arith.cmpf oeq, %195, %200 : vector<1x128xf32>
    %c128_i32_40 = arith.constant 128 : i32
    %202 = vector.broadcast %c128_i32_40 : i32 to vector<1x128xi32>
    %203 = arith.select %201, %10, %202 : vector<1x128xi1>, vector<1x128xi32>
    %204 = vector.shape_cast %203 : vector<1x128xi32> to vector<1x1x128xi32>
    %cst_41 = arith.constant dense<2147483647> : vector<1xi32>
    %205 = vector.multi_reduction <minsi>, %204, %cst_41 [1, 2] : vector<1x1x128xi32> to vector<1xi32>
    %206 = vector.shape_cast %205 : vector<1xi32> to vector<1x1x1xi32>
    %207 = vector.extract %206[0, 0, 0] : i32 from vector<1x1x1xi32>
    %c4_i32 = arith.constant 4 : i32
    %c0_42 = arith.constant 0 : index
    %208 = arith.index_cast %207 : i32 to index
    %c0_43 = arith.constant 0 : index
    %209 = vector.load %arg2[%c0_42, %208, %c0_43] : memref<1x128x3xf32, #tpu.memory_space<vmem>>, vector<1x1x3xf32>
    %210 = vector.shape_cast %209 : vector<1x1x3xf32> to vector<1x3xf32>
    %c0_44 = arith.constant 0 : index
    %211 = arith.index_cast %c4_i32 : i32 to index
    %c0_45 = arith.constant 0 : index
    %212 = vector.load %arg4[%c0_44, %211, %c0_45] : memref<1x8x3xf32, #tpu.memory_space<vmem>>, vector<1x1x3xf32>
    %213 = vector.shape_cast %212 : vector<1x1x3xf32> to vector<1x3xf32>
    %214 = vector.shape_cast %210 : vector<1x3xf32> to vector<1x1x3xf32>
    tpu.vector_store %arg4[%c0_44, %211, %c0_45], %214 {strides = array<i32>} : memref<1x8x3xf32, #tpu.memory_space<vmem>>, vector<1x1x3xf32>,
    %215 = vector.broadcast %207 : i32 to vector<1x128xi32>
    %216 = arith.cmpi eq, %10, %215 : vector<1x128xi32>
    %217 = arith.extui %216 : vector<1x128xi1> to vector<1x128xi32>
    %218 = arith.sitofp %217 : vector<1x128xi32> to vector<1x128xf32>
    %219 = arith.index_cast %c4_i32 : i32 to index
    %c0_46 = arith.constant 0 : index
    %220 = vector.load %arg6[%219, %c0_46] : memref<8x128xf32, #tpu.memory_space<vmem>>, vector<1x128xf32>
    tpu.vector_store %arg6[%219, %c0_46], %218 {strides = array<i32>} : memref<8x128xf32, #tpu.memory_space<vmem>>, vector<1x128xf32>,
    %221 = vector.extract_strided_slice %210 {offsets = [0, 0], sizes = [1, 1], strides = [1, 1]} : vector<1x3xf32> to vector<1x1xf32>
    %222 = vector.extract_strided_slice %210 {offsets = [0, 1], sizes = [1, 1], strides = [1, 1]} : vector<1x3xf32> to vector<1x1xf32>
    %223 = vector.extract_strided_slice %210 {offsets = [0, 2], sizes = [1, 1], strides = [1, 1]} : vector<1x3xf32> to vector<1x1xf32>
    %224 = vector.broadcast %221 : vector<1x1xf32> to vector<1x128xf32>
    %225 = arith.mulf %224, %2 : vector<1x128xf32>
    %226 = vector.broadcast %222 : vector<1x1xf32> to vector<1x128xf32>
    %227 = arith.mulf %226, %3 : vector<1x128xf32>
    %228 = arith.addf %225, %227 : vector<1x128xf32>
    %229 = vector.broadcast %223 : vector<1x1xf32> to vector<1x128xf32>
    %230 = arith.mulf %229, %4 : vector<1x128xf32>
    %231 = arith.addf %228, %230 : vector<1x128xf32>
    %232 = arith.mulf %221, %221 : vector<1x1xf32>
    %233 = arith.mulf %222, %222 : vector<1x1xf32>
    %234 = arith.addf %232, %233 : vector<1x1xf32>
    %235 = arith.mulf %223, %223 : vector<1x1xf32>
    %236 = arith.addf %234, %235 : vector<1x1xf32>
    %cst_47 = arith.constant 2.000000e+00 : f32
    %237 = vector.broadcast %cst_47 : f32 to vector<1x128xf32>
    %238 = arith.mulf %237, %231 : vector<1x128xf32>
    %239 = arith.subf %9, %238 : vector<1x128xf32>
    %240 = vector.broadcast %236 : vector<1x1xf32> to vector<1x128xf32>
    %241 = arith.addf %239, %240 : vector<1x128xf32>
    %242 = arith.index_cast %c4_i32 : i32 to index
    %c0_48 = arith.constant 0 : index
    %243 = vector.load %arg5[%242, %c0_48] : memref<8x128xf32, #tpu.memory_space<vmem>>, vector<1x128xf32>
    tpu.vector_store %arg5[%242, %c0_48], %241 {strides = array<i32>} : memref<8x128xf32, #tpu.memory_space<vmem>>, vector<1x128xf32>,
    %244 = arith.minimumf %195, %241 : vector<1x128xf32>
    %245 = vector.shape_cast %244 : vector<1x128xf32> to vector<1x1x128xf32>
    %cst_49 = arith.constant dense<0xFF800000> : vector<1xf32>
    %246 = vector.multi_reduction <maximumf>, %245, %cst_49 [1, 2] : vector<1x1x128xf32> to vector<1xf32>
    %247 = vector.shape_cast %246 : vector<1xf32> to vector<1x1x1xf32>
    %248 = vector.extract %247[0, 0, 0] : f32 from vector<1x1x1xf32>
    %249 = vector.broadcast %248 : f32 to vector<1x128xf32>
    %250 = arith.cmpf oeq, %244, %249 : vector<1x128xf32>
    %c128_i32_50 = arith.constant 128 : i32
    %251 = vector.broadcast %c128_i32_50 : i32 to vector<1x128xi32>
    %252 = arith.select %250, %10, %251 : vector<1x128xi1>, vector<1x128xi32>
    %253 = vector.shape_cast %252 : vector<1x128xi32> to vector<1x1x128xi32>
    %cst_51 = arith.constant dense<2147483647> : vector<1xi32>
    %254 = vector.multi_reduction <minsi>, %253, %cst_51 [1, 2] : vector<1x1x128xi32> to vector<1xi32>
    %255 = vector.shape_cast %254 : vector<1xi32> to vector<1x1x1xi32>
    %256 = vector.extract %255[0, 0, 0] : i32 from vector<1x1x1xi32>
    %c5_i32 = arith.constant 5 : i32
    %c0_52 = arith.constant 0 : index
    %257 = arith.index_cast %256 : i32 to index
    %c0_53 = arith.constant 0 : index
    %258 = vector.load %arg2[%c0_52, %257, %c0_53] : memref<1x128x3xf32, #tpu.memory_space<vmem>>, vector<1x1x3xf32>
    %259 = vector.shape_cast %258 : vector<1x1x3xf32> to vector<1x3xf32>
    %c0_54 = arith.constant 0 : index
    %260 = arith.index_cast %c5_i32 : i32 to index
    %c0_55 = arith.constant 0 : index
    %261 = vector.load %arg4[%c0_54, %260, %c0_55] : memref<1x8x3xf32, #tpu.memory_space<vmem>>, vector<1x1x3xf32>
    %262 = vector.shape_cast %261 : vector<1x1x3xf32> to vector<1x3xf32>
    %263 = vector.shape_cast %259 : vector<1x3xf32> to vector<1x1x3xf32>
    tpu.vector_store %arg4[%c0_54, %260, %c0_55], %263 {strides = array<i32>} : memref<1x8x3xf32, #tpu.memory_space<vmem>>, vector<1x1x3xf32>,
    %264 = vector.broadcast %256 : i32 to vector<1x128xi32>
    %265 = arith.cmpi eq, %10, %264 : vector<1x128xi32>
    %266 = arith.extui %265 : vector<1x128xi1> to vector<1x128xi32>
    %267 = arith.sitofp %266 : vector<1x128xi32> to vector<1x128xf32>
    %268 = arith.index_cast %c5_i32 : i32 to index
    %c0_56 = arith.constant 0 : index
    %269 = vector.load %arg6[%268, %c0_56] : memref<8x128xf32, #tpu.memory_space<vmem>>, vector<1x128xf32>
    tpu.vector_store %arg6[%268, %c0_56], %267 {strides = array<i32>} : memref<8x128xf32, #tpu.memory_space<vmem>>, vector<1x128xf32>,
    %270 = vector.extract_strided_slice %259 {offsets = [0, 0], sizes = [1, 1], strides = [1, 1]} : vector<1x3xf32> to vector<1x1xf32>
    %271 = vector.extract_strided_slice %259 {offsets = [0, 1], sizes = [1, 1], strides = [1, 1]} : vector<1x3xf32> to vector<1x1xf32>
    %272 = vector.extract_strided_slice %259 {offsets = [0, 2], sizes = [1, 1], strides = [1, 1]} : vector<1x3xf32> to vector<1x1xf32>
    %273 = vector.broadcast %270 : vector<1x1xf32> to vector<1x128xf32>
    %274 = arith.mulf %273, %2 : vector<1x128xf32>
    %275 = vector.broadcast %271 : vector<1x1xf32> to vector<1x128xf32>
    %276 = arith.mulf %275, %3 : vector<1x128xf32>
    %277 = arith.addf %274, %276 : vector<1x128xf32>
    %278 = vector.broadcast %272 : vector<1x1xf32> to vector<1x128xf32>
    %279 = arith.mulf %278, %4 : vector<1x128xf32>
    %280 = arith.addf %277, %279 : vector<1x128xf32>
    %281 = arith.mulf %270, %270 : vector<1x1xf32>
    %282 = arith.mulf %271, %271 : vector<1x1xf32>
    %283 = arith.addf %281, %282 : vector<1x1xf32>
    %284 = arith.mulf %272, %272 : vector<1x1xf32>
    %285 = arith.addf %283, %284 : vector<1x1xf32>
    %cst_57 = arith.constant 2.000000e+00 : f32
    %286 = vector.broadcast %cst_57 : f32 to vector<1x128xf32>
    %287 = arith.mulf %286, %280 : vector<1x128xf32>
    %288 = arith.subf %9, %287 : vector<1x128xf32>
    %289 = vector.broadcast %285 : vector<1x1xf32> to vector<1x128xf32>
    %290 = arith.addf %288, %289 : vector<1x128xf32>
    %291 = arith.index_cast %c5_i32 : i32 to index
    %c0_58 = arith.constant 0 : index
    %292 = vector.load %arg5[%291, %c0_58] : memref<8x128xf32, #tpu.memory_space<vmem>>, vector<1x128xf32>
    tpu.vector_store %arg5[%291, %c0_58], %290 {strides = array<i32>} : memref<8x128xf32, #tpu.memory_space<vmem>>, vector<1x128xf32>,
    %293 = arith.minimumf %244, %290 : vector<1x128xf32>
    %294 = vector.shape_cast %293 : vector<1x128xf32> to vector<1x1x128xf32>
    %cst_59 = arith.constant dense<0xFF800000> : vector<1xf32>
    %295 = vector.multi_reduction <maximumf>, %294, %cst_59 [1, 2] : vector<1x1x128xf32> to vector<1xf32>
    %296 = vector.shape_cast %295 : vector<1xf32> to vector<1x1x1xf32>
    %297 = vector.extract %296[0, 0, 0] : f32 from vector<1x1x1xf32>
    %298 = vector.broadcast %297 : f32 to vector<1x128xf32>
    %299 = arith.cmpf oeq, %293, %298 : vector<1x128xf32>
    %c128_i32_60 = arith.constant 128 : i32
    %300 = vector.broadcast %c128_i32_60 : i32 to vector<1x128xi32>
    %301 = arith.select %299, %10, %300 : vector<1x128xi1>, vector<1x128xi32>
    %302 = vector.shape_cast %301 : vector<1x128xi32> to vector<1x1x128xi32>
    %cst_61 = arith.constant dense<2147483647> : vector<1xi32>
    %303 = vector.multi_reduction <minsi>, %302, %cst_61 [1, 2] : vector<1x1x128xi32> to vector<1xi32>
    %304 = vector.shape_cast %303 : vector<1xi32> to vector<1x1x1xi32>
    %305 = vector.extract %304[0, 0, 0] : i32 from vector<1x1x1xi32>
    %c6_i32 = arith.constant 6 : i32
    %c0_62 = arith.constant 0 : index
    %306 = arith.index_cast %305 : i32 to index
    %c0_63 = arith.constant 0 : index
    %307 = vector.load %arg2[%c0_62, %306, %c0_63] : memref<1x128x3xf32, #tpu.memory_space<vmem>>, vector<1x1x3xf32>
    %308 = vector.shape_cast %307 : vector<1x1x3xf32> to vector<1x3xf32>
    %c0_64 = arith.constant 0 : index
    %309 = arith.index_cast %c6_i32 : i32 to index
    %c0_65 = arith.constant 0 : index
    %310 = vector.load %arg4[%c0_64, %309, %c0_65] : memref<1x8x3xf32, #tpu.memory_space<vmem>>, vector<1x1x3xf32>
    %311 = vector.shape_cast %310 : vector<1x1x3xf32> to vector<1x3xf32>
    %312 = vector.shape_cast %308 : vector<1x3xf32> to vector<1x1x3xf32>
    tpu.vector_store %arg4[%c0_64, %309, %c0_65], %312 {strides = array<i32>} : memref<1x8x3xf32, #tpu.memory_space<vmem>>, vector<1x1x3xf32>,
    %313 = vector.broadcast %305 : i32 to vector<1x128xi32>
    %314 = arith.cmpi eq, %10, %313 : vector<1x128xi32>
    %315 = arith.extui %314 : vector<1x128xi1> to vector<1x128xi32>
    %316 = arith.sitofp %315 : vector<1x128xi32> to vector<1x128xf32>
    %317 = arith.index_cast %c6_i32 : i32 to index
    %c0_66 = arith.constant 0 : index
    %318 = vector.load %arg6[%317, %c0_66] : memref<8x128xf32, #tpu.memory_space<vmem>>, vector<1x128xf32>
    tpu.vector_store %arg6[%317, %c0_66], %316 {strides = array<i32>} : memref<8x128xf32, #tpu.memory_space<vmem>>, vector<1x128xf32>,
    %319 = vector.extract_strided_slice %308 {offsets = [0, 0], sizes = [1, 1], strides = [1, 1]} : vector<1x3xf32> to vector<1x1xf32>
    %320 = vector.extract_strided_slice %308 {offsets = [0, 1], sizes = [1, 1], strides = [1, 1]} : vector<1x3xf32> to vector<1x1xf32>
    %321 = vector.extract_strided_slice %308 {offsets = [0, 2], sizes = [1, 1], strides = [1, 1]} : vector<1x3xf32> to vector<1x1xf32>
    %322 = vector.broadcast %319 : vector<1x1xf32> to vector<1x128xf32>
    %323 = arith.mulf %322, %2 : vector<1x128xf32>
    %324 = vector.broadcast %320 : vector<1x1xf32> to vector<1x128xf32>
    %325 = arith.mulf %324, %3 : vector<1x128xf32>
    %326 = arith.addf %323, %325 : vector<1x128xf32>
    %327 = vector.broadcast %321 : vector<1x1xf32> to vector<1x128xf32>
    %328 = arith.mulf %327, %4 : vector<1x128xf32>
    %329 = arith.addf %326, %328 : vector<1x128xf32>
    %330 = arith.mulf %319, %319 : vector<1x1xf32>
    %331 = arith.mulf %320, %320 : vector<1x1xf32>
    %332 = arith.addf %330, %331 : vector<1x1xf32>
    %333 = arith.mulf %321, %321 : vector<1x1xf32>
    %334 = arith.addf %332, %333 : vector<1x1xf32>
    %cst_67 = arith.constant 2.000000e+00 : f32
    %335 = vector.broadcast %cst_67 : f32 to vector<1x128xf32>
    %336 = arith.mulf %335, %329 : vector<1x128xf32>
    %337 = arith.subf %9, %336 : vector<1x128xf32>
    %338 = vector.broadcast %334 : vector<1x1xf32> to vector<1x128xf32>
    %339 = arith.addf %337, %338 : vector<1x128xf32>
    %340 = arith.index_cast %c6_i32 : i32 to index
    %c0_68 = arith.constant 0 : index
    %341 = vector.load %arg5[%340, %c0_68] : memref<8x128xf32, #tpu.memory_space<vmem>>, vector<1x128xf32>
    tpu.vector_store %arg5[%340, %c0_68], %339 {strides = array<i32>} : memref<8x128xf32, #tpu.memory_space<vmem>>, vector<1x128xf32>,
    %342 = arith.minimumf %293, %339 : vector<1x128xf32>
    %343 = vector.shape_cast %342 : vector<1x128xf32> to vector<1x1x128xf32>
    %cst_69 = arith.constant dense<0xFF800000> : vector<1xf32>
    %344 = vector.multi_reduction <maximumf>, %343, %cst_69 [1, 2] : vector<1x1x128xf32> to vector<1xf32>
    %345 = vector.shape_cast %344 : vector<1xf32> to vector<1x1x1xf32>
    %346 = vector.extract %345[0, 0, 0] : f32 from vector<1x1x1xf32>
    %347 = vector.broadcast %346 : f32 to vector<1x128xf32>
    %348 = arith.cmpf oeq, %342, %347 : vector<1x128xf32>
    %c128_i32_70 = arith.constant 128 : i32
    %349 = vector.broadcast %c128_i32_70 : i32 to vector<1x128xi32>
    %350 = arith.select %348, %10, %349 : vector<1x128xi1>, vector<1x128xi32>
    %351 = vector.shape_cast %350 : vector<1x128xi32> to vector<1x1x128xi32>
    %cst_71 = arith.constant dense<2147483647> : vector<1xi32>
    %352 = vector.multi_reduction <minsi>, %351, %cst_71 [1, 2] : vector<1x1x128xi32> to vector<1xi32>
    %353 = vector.shape_cast %352 : vector<1xi32> to vector<1x1x1xi32>
    %354 = vector.extract %353[0, 0, 0] : i32 from vector<1x1x1xi32>
    %c7_i32 = arith.constant 7 : i32
    %c0_72 = arith.constant 0 : index
    %355 = arith.index_cast %354 : i32 to index
    %c0_73 = arith.constant 0 : index
    %356 = vector.load %arg2[%c0_72, %355, %c0_73] : memref<1x128x3xf32, #tpu.memory_space<vmem>>, vector<1x1x3xf32>
    %357 = vector.shape_cast %356 : vector<1x1x3xf32> to vector<1x3xf32>
    %c0_74 = arith.constant 0 : index
    %358 = arith.index_cast %c7_i32 : i32 to index
    %c0_75 = arith.constant 0 : index
    %359 = vector.load %arg4[%c0_74, %358, %c0_75] : memref<1x8x3xf32, #tpu.memory_space<vmem>>, vector<1x1x3xf32>
    %360 = vector.shape_cast %359 : vector<1x1x3xf32> to vector<1x3xf32>
    %361 = vector.shape_cast %357 : vector<1x3xf32> to vector<1x1x3xf32>
    tpu.vector_store %arg4[%c0_74, %358, %c0_75], %361 {strides = array<i32>} : memref<1x8x3xf32, #tpu.memory_space<vmem>>, vector<1x1x3xf32>,
    %362 = vector.broadcast %354 : i32 to vector<1x128xi32>
    %363 = arith.cmpi eq, %10, %362 : vector<1x128xi32>
    %364 = arith.extui %363 : vector<1x128xi1> to vector<1x128xi32>
    %365 = arith.sitofp %364 : vector<1x128xi32> to vector<1x128xf32>
    %366 = arith.index_cast %c7_i32 : i32 to index
    %c0_76 = arith.constant 0 : index
    %367 = vector.load %arg6[%366, %c0_76] : memref<8x128xf32, #tpu.memory_space<vmem>>, vector<1x128xf32>
    tpu.vector_store %arg6[%366, %c0_76], %365 {strides = array<i32>} : memref<8x128xf32, #tpu.memory_space<vmem>>, vector<1x128xf32>,
    %368 = vector.extract_strided_slice %357 {offsets = [0, 0], sizes = [1, 1], strides = [1, 1]} : vector<1x3xf32> to vector<1x1xf32>
    %369 = vector.extract_strided_slice %357 {offsets = [0, 1], sizes = [1, 1], strides = [1, 1]} : vector<1x3xf32> to vector<1x1xf32>
    %370 = vector.extract_strided_slice %357 {offsets = [0, 2], sizes = [1, 1], strides = [1, 1]} : vector<1x3xf32> to vector<1x1xf32>
    %371 = vector.broadcast %368 : vector<1x1xf32> to vector<1x128xf32>
    %372 = arith.mulf %371, %2 : vector<1x128xf32>
    %373 = vector.broadcast %369 : vector<1x1xf32> to vector<1x128xf32>
    %374 = arith.mulf %373, %3 : vector<1x128xf32>
    %375 = arith.addf %372, %374 : vector<1x128xf32>
    %376 = vector.broadcast %370 : vector<1x1xf32> to vector<1x128xf32>
    %377 = arith.mulf %376, %4 : vector<1x128xf32>
    %378 = arith.addf %375, %377 : vector<1x128xf32>
    %379 = arith.mulf %368, %368 : vector<1x1xf32>
    %380 = arith.mulf %369, %369 : vector<1x1xf32>
    %381 = arith.addf %379, %380 : vector<1x1xf32>
    %382 = arith.mulf %370, %370 : vector<1x1xf32>
    %383 = arith.addf %381, %382 : vector<1x1xf32>
    %cst_77 = arith.constant 2.000000e+00 : f32
    %384 = vector.broadcast %cst_77 : f32 to vector<1x128xf32>
    %385 = arith.mulf %384, %378 : vector<1x128xf32>
    %386 = arith.subf %9, %385 : vector<1x128xf32>
    %387 = vector.broadcast %383 : vector<1x1xf32> to vector<1x128xf32>
    %388 = arith.addf %386, %387 : vector<1x128xf32>
    %389 = arith.index_cast %c7_i32 : i32 to index
    %c0_78 = arith.constant 0 : index
    %390 = vector.load %arg5[%389, %c0_78] : memref<8x128xf32, #tpu.memory_space<vmem>>, vector<1x128xf32>
    tpu.vector_store %arg5[%389, %c0_78], %388 {strides = array<i32>} : memref<8x128xf32, #tpu.memory_space<vmem>>, vector<1x128xf32>,
    %391 = arith.minimumf %342, %388 : vector<1x128xf32>
    %392 = vector.shape_cast %391 : vector<1x128xf32> to vector<1x1x128xf32>
    %cst_79 = arith.constant dense<0xFF800000> : vector<1xf32>
    %393 = vector.multi_reduction <maximumf>, %392, %cst_79 [1, 2] : vector<1x1x128xf32> to vector<1xf32>
    %394 = vector.shape_cast %393 : vector<1xf32> to vector<1x1x1xf32>
    %395 = vector.extract %394[0, 0, 0] : f32 from vector<1x1x1xf32>
    %396 = vector.broadcast %395 : f32 to vector<1x128xf32>
    %397 = arith.cmpf oeq, %391, %396 : vector<1x128xf32>
    %c128_i32_80 = arith.constant 128 : i32
    %398 = vector.broadcast %c128_i32_80 : i32 to vector<1x128xi32>
    %399 = arith.select %397, %10, %398 : vector<1x128xi1>, vector<1x128xi32>
    %400 = vector.shape_cast %399 : vector<1x128xi32> to vector<1x1x128xi32>
    %cst_81 = arith.constant dense<2147483647> : vector<1xi32>
    %401 = vector.multi_reduction <minsi>, %400, %cst_81 [1, 2] : vector<1x1x128xi32> to vector<1xi32>
    %402 = vector.shape_cast %401 : vector<1xi32> to vector<1x1x1xi32>
    %403 = vector.extract %402[0, 0, 0] : i32 from vector<1x1x1xi32>
    %c8_i32 = arith.constant 8 : i32
    %c0_82 = arith.constant 0 : index
    %c0_83 = arith.constant 0 : index
    %404 = vector.load %arg6[%c0_82, %c0_83] : memref<8x128xf32, #tpu.memory_space<vmem>>, vector<8x128xf32>
    %405 = tpu.iota {dimensions = array<i32: 1>} : vector<8x128xi32>
    %c0_84 = arith.constant 0 : index
    %c0_85 = arith.constant 0 : index
    %406 = vector.load %arg5[%c0_84, %c0_85] : memref<8x128xf32, #tpu.memory_space<vmem>>, vector<8x128xf32>
    %cst_86 = arith.constant dense<0x7F800000> : vector<8xf32>
    %407 = vector.multi_reduction <minimumf>, %406, %cst_86 [1] : vector<8x128xf32> to vector<8xf32>
    %408 = vector.shape_cast %407 : vector<8xf32> to vector<8x1xf32>
    %409 = vector.broadcast %408 : vector<8x1xf32> to vector<8x128xf32>
    %410 = arith.cmpf oeq, %406, %409 : vector<8x128xf32>
    %c128_i32_87 = arith.constant 128 : i32
    %411 = vector.broadcast %c128_i32_87 : i32 to vector<8x128xi32>
    %412 = arith.select %410, %405, %411 : vector<8x128xi1>, vector<8x128xi32>
    %cst_88 = arith.constant dense<2147483647> : vector<8xi32>
    %413 = vector.multi_reduction <minsi>, %412, %cst_88 [1] : vector<8x128xi32> to vector<8xi32>
    %414 = vector.shape_cast %413 : vector<8xi32> to vector<8x1xi32>
    %415 = vector.broadcast %414 : vector<8x1xi32> to vector<8x128xi32>
    %416 = arith.cmpi eq, %405, %415 : vector<8x128xi32>
    %417 = arith.extui %416 : vector<8x128xi1> to vector<8x128xi32>
    %418 = arith.sitofp %417 : vector<8x128xi32> to vector<8x128xf32>
    %419 = arith.subf %418, %404 : vector<8x128xf32>
    %c0_89 = arith.constant 0 : index
    %c0_90 = arith.constant 0 : index
    %420 = vector.load %arg7[%c0_89, %c0_90] : memref<128x128xf32, #tpu.memory_space<vmem>>, vector<8x128xf32>
    tpu.vector_store %arg7[%c0_89, %c0_90], %419 {strides = array<i32>} : memref<128x128xf32, #tpu.memory_space<vmem>>, vector<8x128xf32>,
    %cst_91 = arith.constant 1.000000e+10 : f32
    %421 = vector.broadcast %cst_91 : f32 to vector<8x128xf32>
    %422 = arith.select %416, %421, %406 : vector<8x128xi1>, vector<8x128xf32>
    %c0_92 = arith.constant 0 : index
    %c0_93 = arith.constant 0 : index
    %423 = vector.load %arg5[%c0_92, %c0_93] : memref<8x128xf32, #tpu.memory_space<vmem>>, vector<8x128xf32>
    tpu.vector_store %arg5[%c0_92, %c0_93], %422 {strides = array<i32>} : memref<8x128xf32, #tpu.memory_space<vmem>>, vector<8x128xf32>,
    %c0_94 = arith.constant 0 : index
    %c0_95 = arith.constant 0 : index
    %424 = vector.load %arg5[%c0_94, %c0_95] : memref<8x128xf32, #tpu.memory_space<vmem>>, vector<8x128xf32>
    %cst_96 = arith.constant dense<0x7F800000> : vector<8xf32>
    %425 = vector.multi_reduction <minimumf>, %424, %cst_96 [1] : vector<8x128xf32> to vector<8xf32>
    %426 = vector.shape_cast %425 : vector<8xf32> to vector<8x1xf32>
    %427 = vector.broadcast %426 : vector<8x1xf32> to vector<8x128xf32>
    %428 = arith.cmpf oeq, %424, %427 : vector<8x128xf32>
    %c128_i32_97 = arith.constant 128 : i32
    %429 = vector.broadcast %c128_i32_97 : i32 to vector<8x128xi32>
    %430 = arith.select %428, %405, %429 : vector<8x128xi1>, vector<8x128xi32>
    %cst_98 = arith.constant dense<2147483647> : vector<8xi32>
    %431 = vector.multi_reduction <minsi>, %430, %cst_98 [1] : vector<8x128xi32> to vector<8xi32>
    %432 = vector.shape_cast %431 : vector<8xi32> to vector<8x1xi32>
    %433 = vector.broadcast %432 : vector<8x1xi32> to vector<8x128xi32>
    %434 = arith.cmpi eq, %405, %433 : vector<8x128xi32>
    %435 = arith.extui %434 : vector<8x128xi1> to vector<8x128xi32>
    %436 = arith.sitofp %435 : vector<8x128xi32> to vector<8x128xf32>
    %437 = arith.subf %436, %404 : vector<8x128xf32>
    %c8 = arith.constant 8 : index
    %c0_99 = arith.constant 0 : index
    %438 = vector.load %arg7[%c8, %c0_99] : memref<128x128xf32, #tpu.memory_space<vmem>>, vector<8x128xf32>
    tpu.vector_store %arg7[%c8, %c0_99], %437 {strides = array<i32>} : memref<128x128xf32, #tpu.memory_space<vmem>>, vector<8x128xf32>,
    %cst_100 = arith.constant 1.000000e+10 : f32
    %439 = vector.broadcast %cst_100 : f32 to vector<8x128xf32>
    %440 = arith.select %434, %439, %424 : vector<8x128xi1>, vector<8x128xf32>
    %c0_101 = arith.constant 0 : index
    %c0_102 = arith.constant 0 : index
    %441 = vector.load %arg5[%c0_101, %c0_102] : memref<8x128xf32, #tpu.memory_space<vmem>>, vector<8x128xf32>
    tpu.vector_store %arg5[%c0_101, %c0_102], %440 {strides = array<i32>} : memref<8x128xf32, #tpu.memory_space<vmem>>, vector<8x128xf32>,
    %c0_103 = arith.constant 0 : index
    %c0_104 = arith.constant 0 : index
    %442 = vector.load %arg5[%c0_103, %c0_104] : memref<8x128xf32, #tpu.memory_space<vmem>>, vector<8x128xf32>
    %cst_105 = arith.constant dense<0x7F800000> : vector<8xf32>
    %443 = vector.multi_reduction <minimumf>, %442, %cst_105 [1] : vector<8x128xf32> to vector<8xf32>
    %444 = vector.shape_cast %443 : vector<8xf32> to vector<8x1xf32>
    %445 = vector.broadcast %444 : vector<8x1xf32> to vector<8x128xf32>
    %446 = arith.cmpf oeq, %442, %445 : vector<8x128xf32>
    %c128_i32_106 = arith.constant 128 : i32
    %447 = vector.broadcast %c128_i32_106 : i32 to vector<8x128xi32>
    %448 = arith.select %446, %405, %447 : vector<8x128xi1>, vector<8x128xi32>
    %cst_107 = arith.constant dense<2147483647> : vector<8xi32>
    %449 = vector.multi_reduction <minsi>, %448, %cst_107 [1] : vector<8x128xi32> to vector<8xi32>
    %450 = vector.shape_cast %449 : vector<8xi32> to vector<8x1xi32>
    %451 = vector.broadcast %450 : vector<8x1xi32> to vector<8x128xi32>
    %452 = arith.cmpi eq, %405, %451 : vector<8x128xi32>
    %453 = arith.extui %452 : vector<8x128xi1> to vector<8x128xi32>
    %454 = arith.sitofp %453 : vector<8x128xi32> to vector<8x128xf32>
    %455 = arith.subf %454, %404 : vector<8x128xf32>
    %c16 = arith.constant 16 : index
    %c0_108 = arith.constant 0 : index
    %456 = vector.load %arg7[%c16, %c0_108] : memref<128x128xf32, #tpu.memory_space<vmem>>, vector<8x128xf32>
    tpu.vector_store %arg7[%c16, %c0_108], %455 {strides = array<i32>} : memref<128x128xf32, #tpu.memory_space<vmem>>, vector<8x128xf32>,
    %cst_109 = arith.constant 1.000000e+10 : f32
    %457 = vector.broadcast %cst_109 : f32 to vector<8x128xf32>
    %458 = arith.select %452, %457, %442 : vector<8x128xi1>, vector<8x128xf32>
    %c0_110 = arith.constant 0 : index
    %c0_111 = arith.constant 0 : index
    %459 = vector.load %arg5[%c0_110, %c0_111] : memref<8x128xf32, #tpu.memory_space<vmem>>, vector<8x128xf32>
    tpu.vector_store %arg5[%c0_110, %c0_111], %458 {strides = array<i32>} : memref<8x128xf32, #tpu.memory_space<vmem>>, vector<8x128xf32>,
    %c0_112 = arith.constant 0 : index
    %c0_113 = arith.constant 0 : index
    %460 = vector.load %arg5[%c0_112, %c0_113] : memref<8x128xf32, #tpu.memory_space<vmem>>, vector<8x128xf32>
    %cst_114 = arith.constant dense<0x7F800000> : vector<8xf32>
    %461 = vector.multi_reduction <minimumf>, %460, %cst_114 [1] : vector<8x128xf32> to vector<8xf32>
    %462 = vector.shape_cast %461 : vector<8xf32> to vector<8x1xf32>
    %463 = vector.broadcast %462 : vector<8x1xf32> to vector<8x128xf32>
    %464 = arith.cmpf oeq, %460, %463 : vector<8x128xf32>
    %c128_i32_115 = arith.constant 128 : i32
    %465 = vector.broadcast %c128_i32_115 : i32 to vector<8x128xi32>
    %466 = arith.select %464, %405, %465 : vector<8x128xi1>, vector<8x128xi32>
    %cst_116 = arith.constant dense<2147483647> : vector<8xi32>
    %467 = vector.multi_reduction <minsi>, %466, %cst_116 [1] : vector<8x128xi32> to vector<8xi32>
    %468 = vector.shape_cast %467 : vector<8xi32> to vector<8x1xi32>
    %469 = vector.broadcast %468 : vector<8x1xi32> to vector<8x128xi32>
    %470 = arith.cmpi eq, %405, %469 : vector<8x128xi32>
    %471 = arith.extui %470 : vector<8x128xi1> to vector<8x128xi32>
    %472 = arith.sitofp %471 : vector<8x128xi32> to vector<8x128xf32>
    %473 = arith.subf %472, %404 : vector<8x128xf32>
    %c24 = arith.constant 24 : index
    %c0_117 = arith.constant 0 : index
    %474 = vector.load %arg7[%c24, %c0_117] : memref<128x128xf32, #tpu.memory_space<vmem>>, vector<8x128xf32>
    tpu.vector_store %arg7[%c24, %c0_117], %473 {strides = array<i32>} : memref<128x128xf32, #tpu.memory_space<vmem>>, vector<8x128xf32>,
    %cst_118 = arith.constant 1.000000e+10 : f32
    %475 = vector.broadcast %cst_118 : f32 to vector<8x128xf32>
    %476 = arith.select %470, %475, %460 : vector<8x128xi1>, vector<8x128xf32>
    %c0_119 = arith.constant 0 : index
    %c0_120 = arith.constant 0 : index
    %477 = vector.load %arg5[%c0_119, %c0_120] : memref<8x128xf32, #tpu.memory_space<vmem>>, vector<8x128xf32>
    tpu.vector_store %arg5[%c0_119, %c0_120], %476 {strides = array<i32>} : memref<8x128xf32, #tpu.memory_space<vmem>>, vector<8x128xf32>,
    %c0_121 = arith.constant 0 : index
    %c0_122 = arith.constant 0 : index
    %478 = vector.load %arg5[%c0_121, %c0_122] : memref<8x128xf32, #tpu.memory_space<vmem>>, vector<8x128xf32>
    %cst_123 = arith.constant dense<0x7F800000> : vector<8xf32>
    %479 = vector.multi_reduction <minimumf>, %478, %cst_123 [1] : vector<8x128xf32> to vector<8xf32>
    %480 = vector.shape_cast %479 : vector<8xf32> to vector<8x1xf32>
    %481 = vector.broadcast %480 : vector<8x1xf32> to vector<8x128xf32>
    %482 = arith.cmpf oeq, %478, %481 : vector<8x128xf32>
    %c128_i32_124 = arith.constant 128 : i32
    %483 = vector.broadcast %c128_i32_124 : i32 to vector<8x128xi32>
    %484 = arith.select %482, %405, %483 : vector<8x128xi1>, vector<8x128xi32>
    %cst_125 = arith.constant dense<2147483647> : vector<8xi32>
    %485 = vector.multi_reduction <minsi>, %484, %cst_125 [1] : vector<8x128xi32> to vector<8xi32>
    %486 = vector.shape_cast %485 : vector<8xi32> to vector<8x1xi32>
    %487 = vector.broadcast %486 : vector<8x1xi32> to vector<8x128xi32>
    %488 = arith.cmpi eq, %405, %487 : vector<8x128xi32>
    %489 = arith.extui %488 : vector<8x128xi1> to vector<8x128xi32>
    %490 = arith.sitofp %489 : vector<8x128xi32> to vector<8x128xf32>
    %491 = arith.subf %490, %404 : vector<8x128xf32>
    %c32 = arith.constant 32 : index
    %c0_126 = arith.constant 0 : index
    %492 = vector.load %arg7[%c32, %c0_126] : memref<128x128xf32, #tpu.memory_space<vmem>>, vector<8x128xf32>
    tpu.vector_store %arg7[%c32, %c0_126], %491 {strides = array<i32>} : memref<128x128xf32, #tpu.memory_space<vmem>>, vector<8x128xf32>,
    %cst_127 = arith.constant 1.000000e+10 : f32
    %493 = vector.broadcast %cst_127 : f32 to vector<8x128xf32>
    %494 = arith.select %488, %493, %478 : vector<8x128xi1>, vector<8x128xf32>
    %c0_128 = arith.constant 0 : index
    %c0_129 = arith.constant 0 : index
    %495 = vector.load %arg5[%c0_128, %c0_129] : memref<8x128xf32, #tpu.memory_space<vmem>>, vector<8x128xf32>
    tpu.vector_store %arg5[%c0_128, %c0_129], %494 {strides = array<i32>} : memref<8x128xf32, #tpu.memory_space<vmem>>, vector<8x128xf32>,
    %c0_130 = arith.constant 0 : index
    %c0_131 = arith.constant 0 : index
    %496 = vector.load %arg5[%c0_130, %c0_131] : memref<8x128xf32, #tpu.memory_space<vmem>>, vector<8x128xf32>
    %cst_132 = arith.constant dense<0x7F800000> : vector<8xf32>
    %497 = vector.multi_reduction <minimumf>, %496, %cst_132 [1] : vector<8x128xf32> to vector<8xf32>
    %498 = vector.shape_cast %497 : vector<8xf32> to vector<8x1xf32>
    %499 = vector.broadcast %498 : vector<8x1xf32> to vector<8x128xf32>
    %500 = arith.cmpf oeq, %496, %499 : vector<8x128xf32>
    %c128_i32_133 = arith.constant 128 : i32
    %501 = vector.broadcast %c128_i32_133 : i32 to vector<8x128xi32>
    %502 = arith.select %500, %405, %501 : vector<8x128xi1>, vector<8x128xi32>
    %cst_134 = arith.constant dense<2147483647> : vector<8xi32>
    %503 = vector.multi_reduction <minsi>, %502, %cst_134 [1] : vector<8x128xi32> to vector<8xi32>
    %504 = vector.shape_cast %503 : vector<8xi32> to vector<8x1xi32>
    %505 = vector.broadcast %504 : vector<8x1xi32> to vector<8x128xi32>
    %506 = arith.cmpi eq, %405, %505 : vector<8x128xi32>
    %507 = arith.extui %506 : vector<8x128xi1> to vector<8x128xi32>
    %508 = arith.sitofp %507 : vector<8x128xi32> to vector<8x128xf32>
    %509 = arith.subf %508, %404 : vector<8x128xf32>
    %c40 = arith.constant 40 : index
    %c0_135 = arith.constant 0 : index
    %510 = vector.load %arg7[%c40, %c0_135] : memref<128x128xf32, #tpu.memory_space<vmem>>, vector<8x128xf32>
    tpu.vector_store %arg7[%c40, %c0_135], %509 {strides = array<i32>} : memref<128x128xf32, #tpu.memory_space<vmem>>, vector<8x128xf32>,
    %cst_136 = arith.constant 1.000000e+10 : f32
    %511 = vector.broadcast %cst_136 : f32 to vector<8x128xf32>
    %512 = arith.select %506, %511, %496 : vector<8x128xi1>, vector<8x128xf32>
    %c0_137 = arith.constant 0 : index
    %c0_138 = arith.constant 0 : index
    %513 = vector.load %arg5[%c0_137, %c0_138] : memref<8x128xf32, #tpu.memory_space<vmem>>, vector<8x128xf32>
    tpu.vector_store %arg5[%c0_137, %c0_138], %512 {strides = array<i32>} : memref<8x128xf32, #tpu.memory_space<vmem>>, vector<8x128xf32>,
    %c0_139 = arith.constant 0 : index
    %c0_140 = arith.constant 0 : index
    %514 = vector.load %arg5[%c0_139, %c0_140] : memref<8x128xf32, #tpu.memory_space<vmem>>, vector<8x128xf32>
    %cst_141 = arith.constant dense<0x7F800000> : vector<8xf32>
    %515 = vector.multi_reduction <minimumf>, %514, %cst_141 [1] : vector<8x128xf32> to vector<8xf32>
    %516 = vector.shape_cast %515 : vector<8xf32> to vector<8x1xf32>
    %517 = vector.broadcast %516 : vector<8x1xf32> to vector<8x128xf32>
    %518 = arith.cmpf oeq, %514, %517 : vector<8x128xf32>
    %c128_i32_142 = arith.constant 128 : i32
    %519 = vector.broadcast %c128_i32_142 : i32 to vector<8x128xi32>
    %520 = arith.select %518, %405, %519 : vector<8x128xi1>, vector<8x128xi32>
    %cst_143 = arith.constant dense<2147483647> : vector<8xi32>
    %521 = vector.multi_reduction <minsi>, %520, %cst_143 [1] : vector<8x128xi32> to vector<8xi32>
    %522 = vector.shape_cast %521 : vector<8xi32> to vector<8x1xi32>
    %523 = vector.broadcast %522 : vector<8x1xi32> to vector<8x128xi32>
    %524 = arith.cmpi eq, %405, %523 : vector<8x128xi32>
    %525 = arith.extui %524 : vector<8x128xi1> to vector<8x128xi32>
    %526 = arith.sitofp %525 : vector<8x128xi32> to vector<8x128xf32>
    %527 = arith.subf %526, %404 : vector<8x128xf32>
    %c48 = arith.constant 48 : index
    %c0_144 = arith.constant 0 : index
    %528 = vector.load %arg7[%c48, %c0_144] : memref<128x128xf32, #tpu.memory_space<vmem>>, vector<8x128xf32>
    tpu.vector_store %arg7[%c48, %c0_144], %527 {strides = array<i32>} : memref<128x128xf32, #tpu.memory_space<vmem>>, vector<8x128xf32>,
    %cst_145 = arith.constant 1.000000e+10 : f32
    %529 = vector.broadcast %cst_145 : f32 to vector<8x128xf32>
    %530 = arith.select %524, %529, %514 : vector<8x128xi1>, vector<8x128xf32>
    %c0_146 = arith.constant 0 : index
    %c0_147 = arith.constant 0 : index
    %531 = vector.load %arg5[%c0_146, %c0_147] : memref<8x128xf32, #tpu.memory_space<vmem>>, vector<8x128xf32>
    tpu.vector_store %arg5[%c0_146, %c0_147], %530 {strides = array<i32>} : memref<8x128xf32, #tpu.memory_space<vmem>>, vector<8x128xf32>,
    %c0_148 = arith.constant 0 : index
    %c0_149 = arith.constant 0 : index
    %532 = vector.load %arg5[%c0_148, %c0_149] : memref<8x128xf32, #tpu.memory_space<vmem>>, vector<8x128xf32>
    %cst_150 = arith.constant dense<0x7F800000> : vector<8xf32>
    %533 = vector.multi_reduction <minimumf>, %532, %cst_150 [1] : vector<8x128xf32> to vector<8xf32>
    %534 = vector.shape_cast %533 : vector<8xf32> to vector<8x1xf32>
    %535 = vector.broadcast %534 : vector<8x1xf32> to vector<8x128xf32>
    %536 = arith.cmpf oeq, %532, %535 : vector<8x128xf32>
    %c128_i32_151 = arith.constant 128 : i32
    %537 = vector.broadcast %c128_i32_151 : i32 to vector<8x128xi32>
    %538 = arith.select %536, %405, %537 : vector<8x128xi1>, vector<8x128xi32>
    %cst_152 = arith.constant dense<2147483647> : vector<8xi32>
    %539 = vector.multi_reduction <minsi>, %538, %cst_152 [1] : vector<8x128xi32> to vector<8xi32>
    %540 = vector.shape_cast %539 : vector<8xi32> to vector<8x1xi32>
    %541 = vector.broadcast %540 : vector<8x1xi32> to vector<8x128xi32>
    %542 = arith.cmpi eq, %405, %541 : vector<8x128xi32>
    %543 = arith.extui %542 : vector<8x128xi1> to vector<8x128xi32>
    %544 = arith.sitofp %543 : vector<8x128xi32> to vector<8x128xf32>
    %545 = arith.subf %544, %404 : vector<8x128xf32>
    %c56 = arith.constant 56 : index
    %c0_153 = arith.constant 0 : index
    %546 = vector.load %arg7[%c56, %c0_153] : memref<128x128xf32, #tpu.memory_space<vmem>>, vector<8x128xf32>
    tpu.vector_store %arg7[%c56, %c0_153], %545 {strides = array<i32>} : memref<128x128xf32, #tpu.memory_space<vmem>>, vector<8x128xf32>,
    %cst_154 = arith.constant 1.000000e+10 : f32
    %547 = vector.broadcast %cst_154 : f32 to vector<8x128xf32>
    %548 = arith.select %542, %547, %532 : vector<8x128xi1>, vector<8x128xf32>
    %c0_155 = arith.constant 0 : index
    %c0_156 = arith.constant 0 : index
    %549 = vector.load %arg5[%c0_155, %c0_156] : memref<8x128xf32, #tpu.memory_space<vmem>>, vector<8x128xf32>
    tpu.vector_store %arg5[%c0_155, %c0_156], %548 {strides = array<i32>} : memref<8x128xf32, #tpu.memory_space<vmem>>, vector<8x128xf32>,
    %c0_157 = arith.constant 0 : index
    %c0_158 = arith.constant 0 : index
    %550 = vector.load %arg5[%c0_157, %c0_158] : memref<8x128xf32, #tpu.memory_space<vmem>>, vector<8x128xf32>
    %cst_159 = arith.constant dense<0x7F800000> : vector<8xf32>
    %551 = vector.multi_reduction <minimumf>, %550, %cst_159 [1] : vector<8x128xf32> to vector<8xf32>
    %552 = vector.shape_cast %551 : vector<8xf32> to vector<8x1xf32>
    %553 = vector.broadcast %552 : vector<8x1xf32> to vector<8x128xf32>
    %554 = arith.cmpf oeq, %550, %553 : vector<8x128xf32>
    %c128_i32_160 = arith.constant 128 : i32
    %555 = vector.broadcast %c128_i32_160 : i32 to vector<8x128xi32>
    %556 = arith.select %554, %405, %555 : vector<8x128xi1>, vector<8x128xi32>
    %cst_161 = arith.constant dense<2147483647> : vector<8xi32>
    %557 = vector.multi_reduction <minsi>, %556, %cst_161 [1] : vector<8x128xi32> to vector<8xi32>
    %558 = vector.shape_cast %557 : vector<8xi32> to vector<8x1xi32>
    %559 = vector.broadcast %558 : vector<8x1xi32> to vector<8x128xi32>
    %560 = arith.cmpi eq, %405, %559 : vector<8x128xi32>
    %561 = arith.extui %560 : vector<8x128xi1> to vector<8x128xi32>
    %562 = arith.sitofp %561 : vector<8x128xi32> to vector<8x128xf32>
    %563 = arith.subf %562, %404 : vector<8x128xf32>
    %c64 = arith.constant 64 : index
    %c0_162 = arith.constant 0 : index
    %564 = vector.load %arg7[%c64, %c0_162] : memref<128x128xf32, #tpu.memory_space<vmem>>, vector<8x128xf32>
    tpu.vector_store %arg7[%c64, %c0_162], %563 {strides = array<i32>} : memref<128x128xf32, #tpu.memory_space<vmem>>, vector<8x128xf32>,
    %cst_163 = arith.constant 1.000000e+10 : f32
    %565 = vector.broadcast %cst_163 : f32 to vector<8x128xf32>
    %566 = arith.select %560, %565, %550 : vector<8x128xi1>, vector<8x128xf32>
    %c0_164 = arith.constant 0 : index
    %c0_165 = arith.constant 0 : index
    %567 = vector.load %arg5[%c0_164, %c0_165] : memref<8x128xf32, #tpu.memory_space<vmem>>, vector<8x128xf32>
    tpu.vector_store %arg5[%c0_164, %c0_165], %566 {strides = array<i32>} : memref<8x128xf32, #tpu.memory_space<vmem>>, vector<8x128xf32>,
    %c0_166 = arith.constant 0 : index
    %c0_167 = arith.constant 0 : index
    %568 = vector.load %arg5[%c0_166, %c0_167] : memref<8x128xf32, #tpu.memory_space<vmem>>, vector<8x128xf32>
    %cst_168 = arith.constant dense<0x7F800000> : vector<8xf32>
    %569 = vector.multi_reduction <minimumf>, %568, %cst_168 [1] : vector<8x128xf32> to vector<8xf32>
    %570 = vector.shape_cast %569 : vector<8xf32> to vector<8x1xf32>
    %571 = vector.broadcast %570 : vector<8x1xf32> to vector<8x128xf32>
    %572 = arith.cmpf oeq, %568, %571 : vector<8x128xf32>
    %c128_i32_169 = arith.constant 128 : i32
    %573 = vector.broadcast %c128_i32_169 : i32 to vector<8x128xi32>
    %574 = arith.select %572, %405, %573 : vector<8x128xi1>, vector<8x128xi32>
    %cst_170 = arith.constant dense<2147483647> : vector<8xi32>
    %575 = vector.multi_reduction <minsi>, %574, %cst_170 [1] : vector<8x128xi32> to vector<8xi32>
    %576 = vector.shape_cast %575 : vector<8xi32> to vector<8x1xi32>
    %577 = vector.broadcast %576 : vector<8x1xi32> to vector<8x128xi32>
    %578 = arith.cmpi eq, %405, %577 : vector<8x128xi32>
    %579 = arith.extui %578 : vector<8x128xi1> to vector<8x128xi32>
    %580 = arith.sitofp %579 : vector<8x128xi32> to vector<8x128xf32>
    %581 = arith.subf %580, %404 : vector<8x128xf32>
    %c72 = arith.constant 72 : index
    %c0_171 = arith.constant 0 : index
    %582 = vector.load %arg7[%c72, %c0_171] : memref<128x128xf32, #tpu.memory_space<vmem>>, vector<8x128xf32>
    tpu.vector_store %arg7[%c72, %c0_171], %581 {strides = array<i32>} : memref<128x128xf32, #tpu.memory_space<vmem>>, vector<8x128xf32>,
    %cst_172 = arith.constant 1.000000e+10 : f32
    %583 = vector.broadcast %cst_172 : f32 to vector<8x128xf32>
    %584 = arith.select %578, %583, %568 : vector<8x128xi1>, vector<8x128xf32>
    %c0_173 = arith.constant 0 : index
    %c0_174 = arith.constant 0 : index
    %585 = vector.load %arg5[%c0_173, %c0_174] : memref<8x128xf32, #tpu.memory_space<vmem>>, vector<8x128xf32>
    tpu.vector_store %arg5[%c0_173, %c0_174], %584 {strides = array<i32>} : memref<8x128xf32, #tpu.memory_space<vmem>>, vector<8x128xf32>,
    %c0_175 = arith.constant 0 : index
    %c0_176 = arith.constant 0 : index
    %586 = vector.load %arg5[%c0_175, %c0_176] : memref<8x128xf32, #tpu.memory_space<vmem>>, vector<8x128xf32>
    %cst_177 = arith.constant dense<0x7F800000> : vector<8xf32>
    %587 = vector.multi_reduction <minimumf>, %586, %cst_177 [1] : vector<8x128xf32> to vector<8xf32>
    %588 = vector.shape_cast %587 : vector<8xf32> to vector<8x1xf32>
    %589 = vector.broadcast %588 : vector<8x1xf32> to vector<8x128xf32>
    %590 = arith.cmpf oeq, %586, %589 : vector<8x128xf32>
    %c128_i32_178 = arith.constant 128 : i32
    %591 = vector.broadcast %c128_i32_178 : i32 to vector<8x128xi32>
    %592 = arith.select %590, %405, %591 : vector<8x128xi1>, vector<8x128xi32>
    %cst_179 = arith.constant dense<2147483647> : vector<8xi32>
    %593 = vector.multi_reduction <minsi>, %592, %cst_179 [1] : vector<8x128xi32> to vector<8xi32>
    %594 = vector.shape_cast %593 : vector<8xi32> to vector<8x1xi32>
    %595 = vector.broadcast %594 : vector<8x1xi32> to vector<8x128xi32>
    %596 = arith.cmpi eq, %405, %595 : vector<8x128xi32>
    %597 = arith.extui %596 : vector<8x128xi1> to vector<8x128xi32>
    %598 = arith.sitofp %597 : vector<8x128xi32> to vector<8x128xf32>
    %599 = arith.subf %598, %404 : vector<8x128xf32>
    %c80 = arith.constant 80 : index
    %c0_180 = arith.constant 0 : index
    %600 = vector.load %arg7[%c80, %c0_180] : memref<128x128xf32, #tpu.memory_space<vmem>>, vector<8x128xf32>
    tpu.vector_store %arg7[%c80, %c0_180], %599 {strides = array<i32>} : memref<128x128xf32, #tpu.memory_space<vmem>>, vector<8x128xf32>,
    %cst_181 = arith.constant 1.000000e+10 : f32
    %601 = vector.broadcast %cst_181 : f32 to vector<8x128xf32>
    %602 = arith.select %596, %601, %586 : vector<8x128xi1>, vector<8x128xf32>
    %c0_182 = arith.constant 0 : index
    %c0_183 = arith.constant 0 : index
    %603 = vector.load %arg5[%c0_182, %c0_183] : memref<8x128xf32, #tpu.memory_space<vmem>>, vector<8x128xf32>
    tpu.vector_store %arg5[%c0_182, %c0_183], %602 {strides = array<i32>} : memref<8x128xf32, #tpu.memory_space<vmem>>, vector<8x128xf32>,
    %c0_184 = arith.constant 0 : index
    %c0_185 = arith.constant 0 : index
    %604 = vector.load %arg5[%c0_184, %c0_185] : memref<8x128xf32, #tpu.memory_space<vmem>>, vector<8x128xf32>
    %cst_186 = arith.constant dense<0x7F800000> : vector<8xf32>
    %605 = vector.multi_reduction <minimumf>, %604, %cst_186 [1] : vector<8x128xf32> to vector<8xf32>
    %606 = vector.shape_cast %605 : vector<8xf32> to vector<8x1xf32>
    %607 = vector.broadcast %606 : vector<8x1xf32> to vector<8x128xf32>
    %608 = arith.cmpf oeq, %604, %607 : vector<8x128xf32>
    %c128_i32_187 = arith.constant 128 : i32
    %609 = vector.broadcast %c128_i32_187 : i32 to vector<8x128xi32>
    %610 = arith.select %608, %405, %609 : vector<8x128xi1>, vector<8x128xi32>
    %cst_188 = arith.constant dense<2147483647> : vector<8xi32>
    %611 = vector.multi_reduction <minsi>, %610, %cst_188 [1] : vector<8x128xi32> to vector<8xi32>
    %612 = vector.shape_cast %611 : vector<8xi32> to vector<8x1xi32>
    %613 = vector.broadcast %612 : vector<8x1xi32> to vector<8x128xi32>
    %614 = arith.cmpi eq, %405, %613 : vector<8x128xi32>
    %615 = arith.extui %614 : vector<8x128xi1> to vector<8x128xi32>
    %616 = arith.sitofp %615 : vector<8x128xi32> to vector<8x128xf32>
    %617 = arith.subf %616, %404 : vector<8x128xf32>
    %c88 = arith.constant 88 : index
    %c0_189 = arith.constant 0 : index
    %618 = vector.load %arg7[%c88, %c0_189] : memref<128x128xf32, #tpu.memory_space<vmem>>, vector<8x128xf32>
    tpu.vector_store %arg7[%c88, %c0_189], %617 {strides = array<i32>} : memref<128x128xf32, #tpu.memory_space<vmem>>, vector<8x128xf32>,
    %cst_190 = arith.constant 1.000000e+10 : f32
    %619 = vector.broadcast %cst_190 : f32 to vector<8x128xf32>
    %620 = arith.select %614, %619, %604 : vector<8x128xi1>, vector<8x128xf32>
    %c0_191 = arith.constant 0 : index
    %c0_192 = arith.constant 0 : index
    %621 = vector.load %arg5[%c0_191, %c0_192] : memref<8x128xf32, #tpu.memory_space<vmem>>, vector<8x128xf32>
    tpu.vector_store %arg5[%c0_191, %c0_192], %620 {strides = array<i32>} : memref<8x128xf32, #tpu.memory_space<vmem>>, vector<8x128xf32>,
    %c0_193 = arith.constant 0 : index
    %c0_194 = arith.constant 0 : index
    %622 = vector.load %arg5[%c0_193, %c0_194] : memref<8x128xf32, #tpu.memory_space<vmem>>, vector<8x128xf32>
    %cst_195 = arith.constant dense<0x7F800000> : vector<8xf32>
    %623 = vector.multi_reduction <minimumf>, %622, %cst_195 [1] : vector<8x128xf32> to vector<8xf32>
    %624 = vector.shape_cast %623 : vector<8xf32> to vector<8x1xf32>
    %625 = vector.broadcast %624 : vector<8x1xf32> to vector<8x128xf32>
    %626 = arith.cmpf oeq, %622, %625 : vector<8x128xf32>
    %c128_i32_196 = arith.constant 128 : i32
    %627 = vector.broadcast %c128_i32_196 : i32 to vector<8x128xi32>
    %628 = arith.select %626, %405, %627 : vector<8x128xi1>, vector<8x128xi32>
    %cst_197 = arith.constant dense<2147483647> : vector<8xi32>
    %629 = vector.multi_reduction <minsi>, %628, %cst_197 [1] : vector<8x128xi32> to vector<8xi32>
    %630 = vector.shape_cast %629 : vector<8xi32> to vector<8x1xi32>
    %631 = vector.broadcast %630 : vector<8x1xi32> to vector<8x128xi32>
    %632 = arith.cmpi eq, %405, %631 : vector<8x128xi32>
    %633 = arith.extui %632 : vector<8x128xi1> to vector<8x128xi32>
    %634 = arith.sitofp %633 : vector<8x128xi32> to vector<8x128xf32>
    %635 = arith.subf %634, %404 : vector<8x128xf32>
    %c96 = arith.constant 96 : index
    %c0_198 = arith.constant 0 : index
    %636 = vector.load %arg7[%c96, %c0_198] : memref<128x128xf32, #tpu.memory_space<vmem>>, vector<8x128xf32>
    tpu.vector_store %arg7[%c96, %c0_198], %635 {strides = array<i32>} : memref<128x128xf32, #tpu.memory_space<vmem>>, vector<8x128xf32>,
    %cst_199 = arith.constant 1.000000e+10 : f32
    %637 = vector.broadcast %cst_199 : f32 to vector<8x128xf32>
    %638 = arith.select %632, %637, %622 : vector<8x128xi1>, vector<8x128xf32>
    %c0_200 = arith.constant 0 : index
    %c0_201 = arith.constant 0 : index
    %639 = vector.load %arg5[%c0_200, %c0_201] : memref<8x128xf32, #tpu.memory_space<vmem>>, vector<8x128xf32>
    tpu.vector_store %arg5[%c0_200, %c0_201], %638 {strides = array<i32>} : memref<8x128xf32, #tpu.memory_space<vmem>>, vector<8x128xf32>,
    %c0_202 = arith.constant 0 : index
    %c0_203 = arith.constant 0 : index
    %640 = vector.load %arg5[%c0_202, %c0_203] : memref<8x128xf32, #tpu.memory_space<vmem>>, vector<8x128xf32>
    %cst_204 = arith.constant dense<0x7F800000> : vector<8xf32>
    %641 = vector.multi_reduction <minimumf>, %640, %cst_204 [1] : vector<8x128xf32> to vector<8xf32>
    %642 = vector.shape_cast %641 : vector<8xf32> to vector<8x1xf32>
    %643 = vector.broadcast %642 : vector<8x1xf32> to vector<8x128xf32>
    %644 = arith.cmpf oeq, %640, %643 : vector<8x128xf32>
    %c128_i32_205 = arith.constant 128 : i32
    %645 = vector.broadcast %c128_i32_205 : i32 to vector<8x128xi32>
    %646 = arith.select %644, %405, %645 : vector<8x128xi1>, vector<8x128xi32>
    %cst_206 = arith.constant dense<2147483647> : vector<8xi32>
    %647 = vector.multi_reduction <minsi>, %646, %cst_206 [1] : vector<8x128xi32> to vector<8xi32>
    %648 = vector.shape_cast %647 : vector<8xi32> to vector<8x1xi32>
    %649 = vector.broadcast %648 : vector<8x1xi32> to vector<8x128xi32>
    %650 = arith.cmpi eq, %405, %649 : vector<8x128xi32>
    %651 = arith.extui %650 : vector<8x128xi1> to vector<8x128xi32>
    %652 = arith.sitofp %651 : vector<8x128xi32> to vector<8x128xf32>
    %653 = arith.subf %652, %404 : vector<8x128xf32>
    %c104 = arith.constant 104 : index
    %c0_207 = arith.constant 0 : index
    %654 = vector.load %arg7[%c104, %c0_207] : memref<128x128xf32, #tpu.memory_space<vmem>>, vector<8x128xf32>
    tpu.vector_store %arg7[%c104, %c0_207], %653 {strides = array<i32>} : memref<128x128xf32, #tpu.memory_space<vmem>>, vector<8x128xf32>,
    %cst_208 = arith.constant 1.000000e+10 : f32
    %655 = vector.broadcast %cst_208 : f32 to vector<8x128xf32>
    %656 = arith.select %650, %655, %640 : vector<8x128xi1>, vector<8x128xf32>
    %c0_209 = arith.constant 0 : index
    %c0_210 = arith.constant 0 : index
    %657 = vector.load %arg5[%c0_209, %c0_210] : memref<8x128xf32, #tpu.memory_space<vmem>>, vector<8x128xf32>
    tpu.vector_store %arg5[%c0_209, %c0_210], %656 {strides = array<i32>} : memref<8x128xf32, #tpu.memory_space<vmem>>, vector<8x128xf32>,
    %c0_211 = arith.constant 0 : index
    %c0_212 = arith.constant 0 : index
    %658 = vector.load %arg5[%c0_211, %c0_212] : memref<8x128xf32, #tpu.memory_space<vmem>>, vector<8x128xf32>
    %cst_213 = arith.constant dense<0x7F800000> : vector<8xf32>
    %659 = vector.multi_reduction <minimumf>, %658, %cst_213 [1] : vector<8x128xf32> to vector<8xf32>
    %660 = vector.shape_cast %659 : vector<8xf32> to vector<8x1xf32>
    %661 = vector.broadcast %660 : vector<8x1xf32> to vector<8x128xf32>
    %662 = arith.cmpf oeq, %658, %661 : vector<8x128xf32>
    %c128_i32_214 = arith.constant 128 : i32
    %663 = vector.broadcast %c128_i32_214 : i32 to vector<8x128xi32>
    %664 = arith.select %662, %405, %663 : vector<8x128xi1>, vector<8x128xi32>
    %cst_215 = arith.constant dense<2147483647> : vector<8xi32>
    %665 = vector.multi_reduction <minsi>, %664, %cst_215 [1] : vector<8x128xi32> to vector<8xi32>
    %666 = vector.shape_cast %665 : vector<8xi32> to vector<8x1xi32>
    %667 = vector.broadcast %666 : vector<8x1xi32> to vector<8x128xi32>
    %668 = arith.cmpi eq, %405, %667 : vector<8x128xi32>
    %669 = arith.extui %668 : vector<8x128xi1> to vector<8x128xi32>
    %670 = arith.sitofp %669 : vector<8x128xi32> to vector<8x128xf32>
    %671 = arith.subf %670, %404 : vector<8x128xf32>
    %c112 = arith.constant 112 : index
    %c0_216 = arith.constant 0 : index
    %672 = vector.load %arg7[%c112, %c0_216] : memref<128x128xf32, #tpu.memory_space<vmem>>, vector<8x128xf32>
    tpu.vector_store %arg7[%c112, %c0_216], %671 {strides = array<i32>} : memref<128x128xf32, #tpu.memory_space<vmem>>, vector<8x128xf32>,
    %cst_217 = arith.constant 1.000000e+10 : f32
    %673 = vector.broadcast %cst_217 : f32 to vector<8x128xf32>
    %674 = arith.select %668, %673, %658 : vector<8x128xi1>, vector<8x128xf32>
    %c0_218 = arith.constant 0 : index
    %c0_219 = arith.constant 0 : index
    %675 = vector.load %arg5[%c0_218, %c0_219] : memref<8x128xf32, #tpu.memory_space<vmem>>, vector<8x128xf32>
    tpu.vector_store %arg5[%c0_218, %c0_219], %674 {strides = array<i32>} : memref<8x128xf32, #tpu.memory_space<vmem>>, vector<8x128xf32>,
    %c0_220 = arith.constant 0 : index
    %c0_221 = arith.constant 0 : index
    %676 = vector.load %arg5[%c0_220, %c0_221] : memref<8x128xf32, #tpu.memory_space<vmem>>, vector<8x128xf32>
    %cst_222 = arith.constant dense<0x7F800000> : vector<8xf32>
    %677 = vector.multi_reduction <minimumf>, %676, %cst_222 [1] : vector<8x128xf32> to vector<8xf32>
    %678 = vector.shape_cast %677 : vector<8xf32> to vector<8x1xf32>
    %679 = vector.broadcast %678 : vector<8x1xf32> to vector<8x128xf32>
    %680 = arith.cmpf oeq, %676, %679 : vector<8x128xf32>
    %c128_i32_223 = arith.constant 128 : i32
    %681 = vector.broadcast %c128_i32_223 : i32 to vector<8x128xi32>
    %682 = arith.select %680, %405, %681 : vector<8x128xi1>, vector<8x128xi32>
    %cst_224 = arith.constant dense<2147483647> : vector<8xi32>
    %683 = vector.multi_reduction <minsi>, %682, %cst_224 [1] : vector<8x128xi32> to vector<8xi32>
    %684 = vector.shape_cast %683 : vector<8xi32> to vector<8x1xi32>
    %685 = vector.broadcast %684 : vector<8x1xi32> to vector<8x128xi32>
    %686 = arith.cmpi eq, %405, %685 : vector<8x128xi32>
    %687 = arith.extui %686 : vector<8x128xi1> to vector<8x128xi32>
    %688 = arith.sitofp %687 : vector<8x128xi32> to vector<8x128xf32>
    %689 = arith.subf %688, %404 : vector<8x128xf32>
    %c120 = arith.constant 120 : index
    %c0_225 = arith.constant 0 : index
    %690 = vector.load %arg7[%c120, %c0_225] : memref<128x128xf32, #tpu.memory_space<vmem>>, vector<8x128xf32>
    tpu.vector_store %arg7[%c120, %c0_225], %689 {strides = array<i32>} : memref<128x128xf32, #tpu.memory_space<vmem>>, vector<8x128xf32>,
    %cst_226 = arith.constant 1.000000e+10 : f32
    %691 = vector.broadcast %cst_226 : f32 to vector<8x128xf32>
    %692 = arith.select %686, %691, %676 : vector<8x128xi1>, vector<8x128xf32>
    %c0_227 = arith.constant 0 : index
    %c0_228 = arith.constant 0 : index
    %693 = vector.load %arg5[%c0_227, %c0_228] : memref<8x128xf32, #tpu.memory_space<vmem>>, vector<8x128xf32>
    tpu.vector_store %arg5[%c0_227, %c0_228], %692 {strides = array<i32>} : memref<8x128xf32, #tpu.memory_space<vmem>>, vector<8x128xf32>,
    %c0_229 = arith.constant 0 : index
    %c0_230 = arith.constant 0 : index
    %694 = vector.load %arg7[%c0_229, %c0_230] : memref<128x128xf32, #tpu.memory_space<vmem>>, vector<128x128xf32>
    %cst_231 = arith.constant dense<0.000000e+00> : vector<3x128xf32>
    %695 = tpu.matmul %1, %694, %cst_231 {dimension_numbers = #tpu.dot_dimension_numbers<[1], [1], [0], [0], [0, 0, 1, 0], [], []>} : vector<3x128xf32>, vector<128x128xf32>, vector<3x128xf32> -> vector<3x128xf32>
    %c0_232 = arith.constant 0 : index
    %c0_233 = arith.constant 0 : index
    %c0_234 = arith.constant 0 : index
    %696 = vector.load %arg3[%c0_232, %c0_233, %c0_234] : memref<1x3x128xf32, #tpu.memory_space<vmem>>, vector<1x3x128xf32>
    %697 = vector.shape_cast %696 : vector<1x3x128xf32> to vector<3x128xf32>
    %698 = vector.shape_cast %695 : vector<3x128xf32> to vector<1x3x128xf32>
    tpu.vector_store %arg3[%c0_232, %c0_233, %c0_234], %698 {strides = array<i32>} : memref<1x3x128xf32, #tpu.memory_space<vmem>>, vector<1x3x128xf32>,
    return
  }
  func.func @transform_0(%arg0: i32) -> (i32, i32, i32) {
    %c0_i32 = arith.constant 0 : i32
    %c0_i32_0 = arith.constant 0 : i32
    %c0_i32_1 = arith.constant 0 : i32
    return %arg0, %c0_i32, %c0_i32_0 : i32, i32, i32
  }
  func.func @transform_1(%arg0: i32) -> (i32, i32, i32) {
    %c0_i32 = arith.constant 0 : i32
    %c0_i32_0 = arith.constant 0 : i32
    %c0_i32_1 = arith.constant 0 : i32
    return %arg0, %c0_i32, %c0_i32_0 : i32, i32, i32
  }
  func.func @transform_2(%arg0: i32) -> (i32, i32, i32) {
    %c0_i32 = arith.constant 0 : i32
    %c0_i32_0 = arith.constant 0 : i32
    %c0_i32_1 = arith.constant 0 : i32
    return %arg0, %c0_i32, %c0_i32_0 : i32, i32, i32
  }
  func.func @transform_3(%arg0: i32) -> (i32, i32, i32) {
    %c0_i32 = arith.constant 0 : i32
    %c0_i32_0 = arith.constant 0 : i32
    %c0_i32_1 = arith.constant 0 : i32
    return %arg0, %c0_i32, %c0_i32_0 : i32, i32, i32
  }
}

</mosaic_0001>

<llo_original>
// kernel: tpu_custom_call.1
$region0: #{tpu_custom_call.1}
  #allocation0 [shape = 'u32[]', space=smem, size = 0x4, offset = 0x4, fixed_abs, tag = 'smem constant byte address 0x4 - core index']
  #allocation1 [shape = 'u32[144,128]{1,0:T(1,128)}', space=vmem, size = 0x12000, scoped, tag = 'internal scratch']
  #allocation2 [shape = 'f32[8,128]{1,0:T(8,128)}', space=vmem, size = 0x1000, scoped, tag = 'scratch operand']
  #allocation3 [shape = 'f32[8,128]{1,0:T(8,128)}', space=vmem, size = 0x1000, scoped, tag = 'scratch operand']
  #allocation4 [shape = 'f32[128,128]{1,0:T(8,128)}', space=vmem, size = 0x10000, scoped, tag = 'scratch operand']
  %s0 = inlined_call_operand.vmem [shape: f32[2,3,128], index: 0, kind: input, shape index: {}]
  %s1 = inlined_call_operand.vmem [shape: f32[2,128,3], index: 1, kind: input, shape index: {}]
  %s2 = inlined_call_operand.vmem [shape: f32[2,3,128], index: 2, kind: output, shape index: {0}]
  %s3 = inlined_call_operand.vmem [shape: f32[2,8,3], index: 3, kind: output, shape index: {1}]
  %4 = xla_tuple %s2, %s3
  %s5 = sld [smem:[#allocation0]]
  $region49: #{tpu_custom_call.1} parent=0
    _
  %s7 = ssub.s32 1, %s5
  %s8 = scalar_select 0, %s7, %s5
  loop: start=0, step=1, limit=4
  $region2: #{tpu_custom_call.1} parent=0 // loop_pre_header
    _
  $region3: #{tpu_custom_call.1} parent=0 // loop_header
    %s10 = sphi 0, %s14
    %p11 = scmp.ge.s32.totalorder %s10, 4
    %s20 = sphi 0, %s22
    %s23 = sphi 0, %s20
    %s24 = sphi 0, %s23
    %s40 = sphi 0, %s24
    %s46 = sphi 0, %s48
    %s49 = sphi 0, %s46
    %s50 = sphi 0, %s49
    %s66 = sphi 0, %s50
    %s72 = sphi 0, %s74
    %s75 = sphi 0, %s72
    %s76 = sphi 0, %s75
    %s92 = sphi 0, %s76
    %s98 = sphi 0, %s100
    %s101 = sphi 0, %s98
    %s102 = sphi 0, %s101
    %s118 = sphi 0, %s102
  $region4: #{tpu_custom_call.1} parent=0 // loop_header_branch
    %13 = sbr.rel (%p11) target = $region8
  $region5: #{tpu_custom_call.1} parent=0 // loop_body
    %s15 = ssub.s32 %s10, 1
    %s16 = ssub.s32 %s10, 2
    %s17 = sadd.s32 %s10, 1
    %s18 = ssub.s32 %s10, %s17
    %p19 = scmp.eq.s32.totalorder %s18, 0
    %s21 = sadd.s32 %s20, 1
    %s22 = scalar_select %p19, %s20, %s21
    %p25 = pneg %p19
    %p26 = scmp.eq.s32.totalorder %s10, 1
    %p27 = por %p25, %p26
    %p28 = scmp.ne.s32.totalorder %s20, %s23
    %p29 = scmp.eq.s32.totalorder %s10, 0
    %p30 = por %p28, %p29
    %p31 = scmp.ne.s32.totalorder %s20, %s23
    %p32 = scmp.eq.s32.totalorder %s15, 1
    %p33 = por %p31, %p32
    %p34 = scmp.ne.s32.totalorder %s23, %s24
    %p35 = scmp.eq.s32.totalorder %s15, 0
    %p36 = por %p34, %p35
    %p37 = scmp.ne.s32.totalorder %s23, %s24
    %p38 = scmp.eq.s32.totalorder %s16, 1
    %p39 = por %p37, %p38
    %p41 = scmp.ne.s32.totalorder %s24, %s40
    %p42 = scmp.eq.s32.totalorder %s16, 0
    %p43 = por %p41, %p42
    %s44 = ssub.s32 %s10, %s17
    %p45 = scmp.eq.s32.totalorder %s44, 0
    %s47 = sadd.s32 %s46, 1
    %s48 = scalar_select %p45, %s46, %s47
    %p51 = pneg %p45
    %p52 = scmp.eq.s32.totalorder %s10, 1
    %p53 = por %p51, %p52
    %p54 = scmp.ne.s32.totalorder %s46, %s49
    %p55 = scmp.eq.s32.totalorder %s10, 0
    %p56 = por %p54, %p55
    %p57 = scmp.ne.s32.totalorder %s46, %s49
    %p58 = scmp.eq.s32.totalorder %s15, 1
    %p59 = por %p57, %p58
    %p60 = scmp.ne.s32.totalorder %s49, %s50
    %p61 = scmp.eq.s32.totalorder %s15, 0
    %p62 = por %p60, %p61
    %p63 = scmp.ne.s32.totalorder %s49, %s50
    %p64 = scmp.eq.s32.totalorder %s16, 1
    %p65 = por %p63, %p64
    %p67 = scmp.ne.s32.totalorder %s50, %s66
    %p68 = scmp.eq.s32.totalorder %s16, 0
    %p69 = por %p67, %p68
    %s70 = ssub.s32 %s10, %s17
    %p71 = scmp.eq.s32.totalorder %s70, 0
    %s73 = sadd.s32 %s72, 1
    %s74 = scalar_select %p71, %s72, %s73
    %p77 = pneg %p71
    %p78 = scmp.eq.s32.totalorder %s10, 1
    %p79 = por %p77, %p78
    %p80 = scmp.ne.s32.totalorder %s72, %s75
    %p81 = scmp.eq.s32.totalorder %s10, 0
    %p82 = por %p80, %p81
    %p83 = scmp.ne.s32.totalorder %s72, %s75
    %p84 = scmp.eq.s32.totalorder %s15, 1
    %p85 = por %p83, %p84
    %p86 = scmp.ne.s32.totalorder %s75, %s76
    %p87 = scmp.eq.s32.totalorder %s15, 0
    %p88 = por %p86, %p87
    %p89 = scmp.ne.s32.totalorder %s75, %s76
    %p90 = scmp.eq.s32.totalorder %s16, 1
    %p91 = por %p89, %p90
    %p93 = scmp.ne.s32.totalorder %s76, %s92
    %p94 = scmp.eq.s32.totalorder %s16, 0
    %p95 = por %p93, %p94
    %s96 = ssub.s32 %s10, %s17
    %p97 = scmp.eq.s32.totalorder %s96, 0
    %s99 = sadd.s32 %s98, 1
    %s100 = scalar_select %p97, %s98, %s99
    %p103 = pneg %p97
    %p104 = scmp.eq.s32.totalorder %s10, 1
    %p105 = por %p103, %p104
    %p106 = scmp.ne.s32.totalorder %s98, %s101
    %p107 = scmp.eq.s32.totalorder %s10, 0
    %p108 = por %p106, %p107
    %p109 = scmp.ne.s32.totalorder %s98, %s101
    %p110 = scmp.eq.s32.totalorder %s15, 1
    %p111 = por %p109, %p110
    %p112 = scmp.ne.s32.totalorder %s101, %s102
    %p113 = scmp.eq.s32.totalorder %s15, 0
    %p114 = por %p112, %p113
    %p115 = scmp.ne.s32.totalorder %s101, %s102
    %p116 = scmp.eq.s32.totalorder %s16, 1
    %p117 = por %p115, %p116
    %p119 = scmp.ne.s32.totalorder %s102, %s118
    %p120 = scmp.eq.s32.totalorder %s16, 0
    %p121 = por %p119, %p120
    %p122 = scmp.le.s32.totalorder 1, %s10
    %p123 = scmp.lt.s32.totalorder %s10, 3
    %p124 = pnand %p122, %p123
    %p125 = pneg %p124
    // Predicated region
    $region9: #{tpu_custom_call.1} parent=5 // pred_check
      _
    $region10: #{tpu_custom_call.1} parent=5 // pred_check_branch
      %127 = sbr.rel (%p124) target = $region12
    $region11: #{tpu_custom_call.1} parent=5 // pred_region
      %s128 = ssub.s32 %s10, 1
    $region12: #{tpu_custom_call.1} parent=5 // pred_fallthru
      _
    %p129 = scmp.lt.s32.totalorder %s10, 2
    // Predicated region
    $region13: #{tpu_custom_call.1} parent=5 // pred_check
      %p130 = pneg %p129
    $region14: #{tpu_custom_call.1} parent=5 // pred_check_branch
      %132 = sbr.rel (%p130) target = $region16
    $region15: #{tpu_custom_call.1} parent=5 // pred_region
      // Predicated region
      $region17: #{tpu_custom_call.1} parent=15 // pred_check
        %p133 = pneg %p30
      $region18: #{tpu_custom_call.1} parent=15 // pred_check_branch
        %135 = sbr.rel (%p133) target = $region20
      $region19: #{tpu_custom_call.1} parent=15 // pred_region
        %p136 = scmp.lt.s32.totalorder %s10, 1
        %s137 = scalar_select %p136, %s10, 1
        %s138 = smul.addr %s137, 4
        %s139 = scalar_lea.vmem %s0, %s138
      $region20: #{tpu_custom_call.1} parent=15 // pred_fallthru
        _
      // Predicated region
      $region21: #{tpu_custom_call.1} parent=15 // pred_check
        %p140 = pneg %p56
      $region22: #{tpu_custom_call.1} parent=15 // pred_check_branch
        %142 = sbr.rel (%p140) target = $region24
      $region23: #{tpu_custom_call.1} parent=15 // pred_region
        %p143 = scmp.lt.s32.totalorder %s10, 1
        %s144 = scalar_select %p143, %s10, 1
        %s145 = smul.addr %s144, 16
        %s146 = smul.addr %s145, 8
        %s147 = scalar_lea.vmem %s1, %s146
      $region24: #{tpu_custom_call.1} parent=15 // pred_fallthru
        _
    $region16: #{tpu_custom_call.1} parent=5 // pred_fallthru
      _
    %p148 = scmp.le.s32.totalorder 1, %s10
    %p149 = scmp.lt.s32.totalorder %s10, 3
    %p150 = pnand %p148, %p149
    %p151 = pneg %p150
    // Predicated region
    $region25: #{tpu_custom_call.1} parent=5 // pred_check
      _
    $region26: #{tpu_custom_call.1} parent=5 // pred_check_branch
      %153 = sbr.rel (%p150) target = $region28
    $region27: #{tpu_custom_call.1} parent=5 // pred_region
      %s154 = ssub.s32 %s10, 1
      %p155 = scmp.lt.s32.totalorder %s15, 1
      %s156 = scalar_select %p155, %s15, 1
      %s157 = smul.addr %s156, 4
      %s158 = scalar_lea.vmem %s0, %s157
      %p159 = pneg %p36
      %p160 = pneg %p33
      %p161 = scmp.lt.s32.totalorder %s15, 1
      %s162 = scalar_select %p161, %s15, 1
      %s163 = smul.addr %s162, 16
      %s164 = smul.addr %s163, 8
      %s165 = scalar_lea.vmem %s1, %s164
      %p166 = pneg %p62
      %p167 = pneg %p59
      %p168 = pneg %p88
      %p169 = pneg %p85
      %p170 = scmp.lt.s32.totalorder %s15, 1
      %s171 = scalar_select %p170, %s15, 1
      %s172 = smul.addr %s171, 4
      %s173 = scalar_lea.vmem %s2, %s172
      %p174 = pneg %p114
      %p175 = pneg %p111
      %p176 = scmp.lt.s32.totalorder %s15, 1
      %s177 = scalar_select %p176, %s15, 1
      %s178 = smul.addr %s177, 8
      %s179 = scalar_lea.vmem %s3, %s178
      %p180 = scmp.lt.s32.totalorder %s15, 1
      %s181 = scalar_select %p180, %s15, 1
      %s182 = smul.addr %s181, 4
      %s183 = scalar_lea.vmem %s0, %s182
      %p184 = scmp.lt.s32.totalorder %s15, 1
      %s185 = scalar_select %p184, %s15, 1
      %s186 = smul.addr %s185, 16
      %s187 = smul.addr %s186, 8
      %s188 = scalar_lea.vmem %s1, %s187
      %p189 = scmp.lt.s32.totalorder %s15, 1
      %s190 = scalar_select %p189, %s15, 1
      %s191 = smul.addr %s190, 4
      %s192 = scalar_lea.vmem %s2, %s191
      %p193 = scmp.lt.s32.totalorder %s15, 1
      %s194 = scalar_select %p193, %s15, 1
      %s195 = smul.addr %s194, 8
      %s196 = scalar_lea.vmem %s3, %s195
      %v197 = vld [vmem:[%s183] sm:$0x7]
      %v198 = vmul.f32 %v197, %v197
      %v200 = vrot.slane %v198, 1
      %v202 = vadd.f32 %v198, %v200
      %v203 = vrot.slane %v198, 2
      %v205 = vadd.f32 %v202, %v203
      %v206 = vlaneseq
      %v207 = vand.u32 %v206, 127
      %v208 = vld [vmem:[%s188] sm:$0x1]
      %vm209 = vcmask 16384
      %210 = vst.msk [vmem:[%s196] sm:$0x1] %vm209, %v208
      %vm211 = vcmp.eq.s32.totalorder %v207, 0
      %v212 = vsel %vm211, 1, 0
      %v213 = vcvt.s32.f32 %v212
      %214 = vst [vmem:[#allocation3] sm:$0x1] %v213
      %216 = vset.pattern.permute.xlu0 0
      %217 = vperm.xlu0 %216, %v208
      %v218 = vpop.permute.xlu0 %217
      %v220 = vmul.f32 %v218, %v197
      %221 = vset.pattern.permute.xlu0 1
      %222 = vperm.xlu0 %221, %v208
      %v223 = vpop.permute.xlu0 %222
      %v226 = vrot.slane %v197, 1
      %v228 = vmul.f32 %v223, %v226
      %v229 = vadd.f32 %v220, %v228
      %230 = vset.pattern.permute.xlu0 2
      %231 = vperm.xlu0 %230, %v208
      %v232 = vpop.permute.xlu0 %231
      %v234 = vrot.slane %v197, 2
      %v236 = vmul.f32 %v232, %v234
      %v237 = vadd.f32 %v229, %v236
      %v238 = vmul.f32 %v208, %v208
      %240 = vrot.lane.b32.xlu0 %v238, 127
      %v241 = vpop.permute.xlu0 %240
      %v243 = vadd.f32 %v238, %v241
      %244 = vrot.lane.b32.xlu0 %v238, 126
      %v245 = vpop.permute.xlu0 %244
      %v247 = vadd.f32 %v243, %v245
      %v248 = vmul.f32 %v237, 2.0
      %v249 = vsub.f32 %v205, %v248
      %251 = vset.pattern.permute.xlu0 0
      %252 = vperm.xlu0 %251, %v247
      %v253 = vpop.permute.xlu0 %252
      %v255 = vadd.f32 %v249, %v253
      %256 = vst [vmem:[#allocation2] sm:$0x1] %v255
      %v257 = vmin.f32 %v255, 1e+10
      %vm258 = vcmask 1040384
      %v259 = vsel %vm258, %v257, -inf
      %260 = vmax.xlane.f32.xlu0 %v259
      %v261 = vpop.xlane.xlu0 %260
      %v262 = vrot.slane %v261, 4
      %v263 = vmax.f32 %v261, %v262
      %v264 = vrot.slane %v263, 2
      %v265 = vmax.f32 %v263, %v264
      %v266 = vrot.slane %v265, 1
      %v267 = vmax.f32 %v265, %v266
      %s268 = vtos %v267
      %v269 = vstv %s268
      %vm270 = vcmp.eq.f32.partialorder %v257, %v269
      %v271 = vsel %vm270, %v207, 128
      %v272 = vsel %vm258, %v271, 2147483647
      %v273 = vand.u32 %v272, 65535
      %v274 = vshra.s32 %v272, 16
      %v275 = vcvt.s32.f32 %v273
      %v276 = vcvt.s32.f32 %v274
      %277 = vmin.xlane.f32.xlu0 %v276
      %v278 = vpop.xlane.xlu0 %277
      %vm279 = vcmp.eq.f32.partialorder %v276, %v278
      %v280 = vsel %vm279, %v275, inf
      %281 = vmin.xlane.f32.xlu0 %v280
      %v282 = vpop.xlane.xlu0 %281
      %v283 = vcvt.f32.s32 %v282
      %v284 = vcvt.f32.s32 %v278
      %v285 = vshll.u32 %v284, 16
      %v286 = vadd.s32 %v285, %v283
      %v287 = vrot.slane %v286, 4
      %vm288 = vcmp.lt.s32.totalorder %v286, %v287
      %v289 = vsel %vm288, %v286, %v287
      %v290 = vrot.slane %v289, 2
      %vm291 = vcmp.lt.s32.totalorder %v289, %v290
      %v292 = vsel %vm291, %v289, %v290
      %v293 = vrot.slane %v292, 1
      %vm294 = vcmp.lt.s32.totalorder %v292, %v293
      %v295 = vsel %vm294, %v292, %v293
      %s296 = vtos %v295
      %s297 = scalar_lea.vmem %s188, %s296
      %v298 = vld [vmem:[%s297] sm:$0x1]
      %299 = vst.msk [vmem:[%s196 + $0x1] sm:$0x1] %vm209, %v298
      %v300 = vstv %s296
      %vm301 = vcmp.eq.s32.totalorder %v207, %v300
      %v302 = vsel %vm301, 1, 0
      %v303 = vcvt.s32.f32 %v302
      %304 = vst [vmem:[#allocation3 + $0x1] sm:$0x1] %v303
      %306 = vset.pattern.permute.xlu0 0
      %307 = vperm.xlu0 %306, %v298
      %v308 = vpop.permute.xlu0 %307
      %v310 = vmul.f32 %v308, %v197
      %311 = vset.pattern.permute.xlu0 1
      %312 = vperm.xlu0 %311, %v298
      %v313 = vpop.permute.xlu0 %312
      %v315 = vmul.f32 %v313, %v226
      %v316 = vadd.f32 %v310, %v315
      %317 = vset.pattern.permute.xlu0 2
      %318 = vperm.xlu0 %317, %v298
      %v319 = vpop.permute.xlu0 %318
      %v321 = vmul.f32 %v319, %v234
      %v322 = vadd.f32 %v316, %v321
      %v323 = vmul.f32 %v298, %v298
      %325 = vrot.lane.b32.xlu0 %v323, 127
      %v326 = vpop.permute.xlu0 %325
      %v328 = vadd.f32 %v323, %v326
      %329 = vrot.lane.b32.xlu0 %v323, 126
      %v330 = vpop.permute.xlu0 %329
      %v332 = vadd.f32 %v328, %v330
      %v333 = vmul.f32 %v322, 2.0
      %v334 = vsub.f32 %v205, %v333
      %336 = vset.pattern.permute.xlu0 0
      %337 = vperm.xlu0 %336, %v332
      %v338 = vpop.permute.xlu0 %337
      %v340 = vadd.f32 %v334, %v338
      %341 = vst [vmem:[#allocation2 + $0x1] sm:$0x1] %v340
      %v342 = vmin.f32 %v257, %v340
      %v343 = vsel %vm258, %v342, -inf
      %344 = vmax.xlane.f32.xlu0 %v343
      %v345 = vpop.xlane.xlu0 %344
      %v346 = vrot.slane %v345, 4
      %v347 = vmax.f32 %v345, %v346
      %v348 = vrot.slane %v347, 2
      %v349 = vmax.f32 %v347, %v348
      %v350 = vrot.slane %v349, 1
      %v351 = vmax.f32 %v349, %v350
      %s352 = vtos %v351
      %v353 = vstv %s352
      %vm354 = vcmp.eq.f32.partialorder %v342, %v353
      %v355 = vsel %vm354, %v207, 128
      %v356 = vsel %vm258, %v355, 2147483647
      %v357 = vand.u32 %v356, 65535
      %v358 = vshra.s32 %v356, 16
      %v359 = vcvt.s32.f32 %v357
      %v360 = vcvt.s32.f32 %v358
      %361 = vmin.xlane.f32.xlu0 %v360
      %v362 = vpop.xlane.xlu0 %361
      %vm363 = vcmp.eq.f32.partialorder %v360, %v362
      %v364 = vsel %vm363, %v359, inf
      %365 = vmin.xlane.f32.xlu0 %v364
      %v366 = vpop.xlane.xlu0 %365
      %v367 = vcvt.f32.s32 %v366
      %v368 = vcvt.f32.s32 %v362
      %v369 = vshll.u32 %v368, 16
      %v370 = vadd.s32 %v369, %v367
      %v371 = vrot.slane %v370, 4
      %vm372 = vcmp.lt.s32.totalorder %v370, %v371
      %v373 = vsel %vm372, %v370, %v371
      %v374 = vrot.slane %v373, 2
      %vm375 = vcmp.lt.s32.totalorder %v373, %v374
      %v376 = vsel %vm375, %v373, %v374
      %v377 = vrot.slane %v376, 1
      %vm378 = vcmp.lt.s32.totalorder %v376, %v377
      %v379 = vsel %vm378, %v376, %v377
      %s380 = vtos %v379
      %s381 = scalar_lea.vmem %s188, %s380
      %v382 = vld [vmem:[%s381] sm:$0x1]
      %383 = vst.msk [vmem:[%s196 + $0x2] sm:$0x1] %vm209, %v382
      %v384 = vstv %s380
      %vm385 = vcmp.eq.s32.totalorder %v207, %v384
      %v386 = vsel %vm385, 1, 0
      %v387 = vcvt.s32.f32 %v386
      %388 = vst [vmem:[#allocation3 + $0x2] sm:$0x1] %v387
      %390 = vset.pattern.permute.xlu0 0
      %391 = vperm.xlu0 %390, %v382
      %v392 = vpop.permute.xlu0 %391
      %v394 = vmul.f32 %v392, %v197
      %395 = vset.pattern.permute.xlu0 1
      %396 = vperm.xlu0 %395, %v382
      %v397 = vpop.permute.xlu0 %396
      %v399 = vmul.f32 %v397, %v226
      %v400 = vadd.f32 %v394, %v399
      %401 = vset.pattern.permute.xlu0 2
      %402 = vperm.xlu0 %401, %v382
      %v403 = vpop.permute.xlu0 %402
      %v405 = vmul.f32 %v403, %v234
      %v406 = vadd.f32 %v400, %v405
      %v407 = vmul.f32 %v382, %v382
      %409 = vrot.lane.b32.xlu0 %v407, 127
      %v410 = vpop.permute.xlu0 %409
      %v412 = vadd.f32 %v407, %v410
      %413 = vrot.lane.b32.xlu0 %v407, 126
      %v414 = vpop.permute.xlu0 %413
      %v416 = vadd.f32 %v412, %v414
      %v417 = vmul.f32 %v406, 2.0
      %v418 = vsub.f32 %v205, %v417
      %420 = vset.pattern.permute.xlu0 0
      %421 = vperm.xlu0 %420, %v416
      %v422 = vpop.permute.xlu0 %421
      %v424 = vadd.f32 %v418, %v422
      %425 = vst [vmem:[#allocation2 + $0x2] sm:$0x1] %v424
      %v426 = vmin.f32 %v342, %v424
      %v427 = vsel %vm258, %v426, -inf
      %428 = vmax.xlane.f32.xlu0 %v427
      %v429 = vpop.xlane.xlu0 %428
      %v430 = vrot.slane %v429, 4
      %v431 = vmax.f32 %v429, %v430
      %v432 = vrot.slane %v431, 2
      %v433 = vmax.f32 %v431, %v432
      %v434 = vrot.slane %v433, 1
      %v435 = vmax.f32 %v433, %v434
      %s436 = vtos %v435
      %v437 = vstv %s436
      %vm438 = vcmp.eq.f32.partialorder %v426, %v437
      %v439 = vsel %vm438, %v207, 128
      %v440 = vsel %vm258, %v439, 2147483647
      %v441 = vand.u32 %v440, 65535
      %v442 = vshra.s32 %v440, 16
      %v443 = vcvt.s32.f32 %v441
      %v444 = vcvt.s32.f32 %v442
      %445 = vmin.xlane.f32.xlu0 %v444
      %v446 = vpop.xlane.xlu0 %445
      %vm447 = vcmp.eq.f32.partialorder %v444, %v446
      %v448 = vsel %vm447, %v443, inf
      %449 = vmin.xlane.f32.xlu0 %v448
      %v450 = vpop.xlane.xlu0 %449
      %v451 = vcvt.f32.s32 %v450
      %v452 = vcvt.f32.s32 %v446
      %v453 = vshll.u32 %v452, 16
      %v454 = vadd.s32 %v453, %v451
      %v455 = vrot.slane %v454, 4
      %vm456 = vcmp.lt.s32.totalorder %v454, %v455
      %v457 = vsel %vm456, %v454, %v455
      %v458 = vrot.slane %v457, 2
      %vm459 = vcmp.lt.s32.totalorder %v457, %v458
      %v460 = vsel %vm459, %v457, %v458
      %v461 = vrot.slane %v460, 1
      %vm462 = vcmp.lt.s32.totalorder %v460, %v461
      %v463 = vsel %vm462, %v460, %v461
      %s464 = vtos %v463
      %s465 = scalar_lea.vmem %s188, %s464
      %v466 = vld [vmem:[%s465] sm:$0x1]
      %467 = vst.msk [vmem:[%s196 + $0x3] sm:$0x1] %vm209, %v466
      %v468 = vstv %s464
      %vm469 = vcmp.eq.s32.totalorder %v207, %v468
      %v470 = vsel %vm469, 1, 0
      %v471 = vcvt.s32.f32 %v470
      %472 = vst [vmem:[#allocation3 + $0x3] sm:$0x1] %v471
      %474 = vset.pattern.permute.xlu0 0
      %475 = vperm.xlu0 %474, %v466
      %v476 = vpop.permute.xlu0 %475
      %v478 = vmul.f32 %v476, %v197
      %479 = vset.pattern.permute.xlu0 1
      %480 = vperm.xlu0 %479, %v466
      %v481 = vpop.permute.xlu0 %480
      %v483 = vmul.f32 %v481, %v226
      %v484 = vadd.f32 %v478, %v483
      %485 = vset.pattern.permute.xlu0 2
      %486 = vperm.xlu0 %485, %v466
      %v487 = vpop.permute.xlu0 %486
      %v489 = vmul.f32 %v487, %v234
      %v490 = vadd.f32 %v484, %v489
      %v491 = vmul.f32 %v466, %v466
      %493 = vrot.lane.b32.xlu0 %v491, 127
      %v494 = vpop.permute.xlu0 %493
      %v496 = vadd.f32 %v491, %v494
      %497 = vrot.lane.b32.xlu0 %v491, 126
      %v498 = vpop.permute.xlu0 %497
      %v500 = vadd.f32 %v496, %v498
      %v501 = vmul.f32 %v490, 2.0
      %v502 = vsub.f32 %v205, %v501
      %504 = vset.pattern.permute.xlu0 0
      %505 = vperm.xlu0 %504, %v500
      %v506 = vpop.permute.xlu0 %505
      %v508 = vadd.f32 %v502, %v506
      %509 = vst [vmem:[#allocation2 + $0x3] sm:$0x1] %v508
      %v510 = vmin.f32 %v426, %v508
      %v511 = vsel %vm258, %v510, -inf
      %512 = vmax.xlane.f32.xlu0 %v511
      %v513 = vpop.xlane.xlu0 %512
      %v514 = vrot.slane %v513, 4
      %v515 = vmax.f32 %v513, %v514
      %v516 = vrot.slane %v515, 2
      %v517 = vmax.f32 %v515, %v516
      %v518 = vrot.slane %v517, 1
      %v519 = vmax.f32 %v517, %v518
      %s520 = vtos %v519
      %v521 = vstv %s520
      %vm522 = vcmp.eq.f32.partialorder %v510, %v521
      %v523 = vsel %vm522, %v207, 128
      %v524 = vsel %vm258, %v523, 2147483647
      %v525 = vand.u32 %v524, 65535
      %v526 = vshra.s32 %v524, 16
      %v527 = vcvt.s32.f32 %v525
      %v528 = vcvt.s32.f32 %v526
      %529 = vmin.xlane.f32.xlu0 %v528
      %v530 = vpop.xlane.xlu0 %529
      %vm531 = vcmp.eq.f32.partialorder %v528, %v530
      %v532 = vsel %vm531, %v527, inf
      %533 = vmin.xlane.f32.xlu0 %v532
      %v534 = vpop.xlane.xlu0 %533
      %v535 = vcvt.f32.s32 %v534
      %v536 = vcvt.f32.s32 %v530
      %v537 = vshll.u32 %v536, 16
      %v538 = vadd.s32 %v537, %v535
      %v539 = vrot.slane %v538, 4
      %vm540 = vcmp.lt.s32.totalorder %v538, %v539
      %v541 = vsel %vm540, %v538, %v539
      %v542 = vrot.slane %v541, 2
      %vm543 = vcmp.lt.s32.totalorder %v541, %v542
      %v544 = vsel %vm543, %v541, %v542
      %v545 = vrot.slane %v544, 1
      %vm546 = vcmp.lt.s32.totalorder %v544, %v545
      %v547 = vsel %vm546, %v544, %v545
      %s548 = vtos %v547
      %s549 = scalar_lea.vmem %s188, %s548
      %v550 = vld [vmem:[%s549] sm:$0x1]
      %551 = vst.msk [vmem:[%s196 + $0x4] sm:$0x1] %vm209, %v550
      %v552 = vstv %s548
      %vm553 = vcmp.eq.s32.totalorder %v207, %v552
      %v554 = vsel %vm553, 1, 0
      %v555 = vcvt.s32.f32 %v554
      %556 = vst [vmem:[#allocation3 + $0x4] sm:$0x1] %v555
      %558 = vset.pattern.permute.xlu0 0
      %559 = vperm.xlu0 %558, %v550
      %v560 = vpop.permute.xlu0 %559
      %v562 = vmul.f32 %v560, %v197
      %563 = vset.pattern.permute.xlu0 1
      %564 = vperm.xlu0 %563, %v550
      %v565 = vpop.permute.xlu0 %564
      %v567 = vmul.f32 %v565, %v226
      %v568 = vadd.f32 %v562, %v567
      %569 = vset.pattern.permute.xlu0 2
      %570 = vperm.xlu0 %569, %v550
      %v571 = vpop.permute.xlu0 %570
      %v573 = vmul.f32 %v571, %v234
      %v574 = vadd.f32 %v568, %v573
      %v575 = vmul.f32 %v550, %v550
      %577 = vrot.lane.b32.xlu0 %v575, 127
      %v578 = vpop.permute.xlu0 %577
      %v580 = vadd.f32 %v575, %v578
      %581 = vrot.lane.b32.xlu0 %v575, 126
      %v582 = vpop.permute.xlu0 %581
      %v584 = vadd.f32 %v580, %v582
      %v585 = vmul.f32 %v574, 2.0
      %v586 = vsub.f32 %v205, %v585
      %588 = vset.pattern.permute.xlu0 0
      %589 = vperm.xlu0 %588, %v584
      %v590 = vpop.permute.xlu0 %589
      %v592 = vadd.f32 %v586, %v590
      %593 = vst [vmem:[#allocation2 + $0x4] sm:$0x1] %v592
      %v594 = vmin.f32 %v510, %v592
      %v595 = vsel %vm258, %v594, -inf
      %596 = vmax.xlane.f32.xlu0 %v595
      %v597 = vpop.xlane.xlu0 %596
      %v598 = vrot.slane %v597, 4
      %v599 = vmax.f32 %v597, %v598
      %v600 = vrot.slane %v599, 2
      %v601 = vmax.f32 %v599, %v600
      %v602 = vrot.slane %v601, 1
      %v603 = vmax.f32 %v601, %v602
      %s604 = vtos %v603
      %v605 = vstv %s604
      %vm606 = vcmp.eq.f32.partialorder %v594, %v605
      %v607 = vsel %vm606, %v207, 128
      %v608 = vsel %vm258, %v607, 2147483647
      %v609 = vand.u32 %v608, 65535
      %v610 = vshra.s32 %v608, 16
      %v611 = vcvt.s32.f32 %v609
      %v612 = vcvt.s32.f32 %v610
      %613 = vmin.xlane.f32.xlu0 %v612
      %v614 = vpop.xlane.xlu0 %613
      %vm615 = vcmp.eq.f32.partialorder %v612, %v614
      %v616 = vsel %vm615, %v611, inf
      %617 = vmin.xlane.f32.xlu0 %v616
      %v618 = vpop.xlane.xlu0 %617
      %v619 = vcvt.f32.s32 %v618
      %v620 = vcvt.f32.s32 %v614
      %v621 = vshll.u32 %v620, 16
      %v622 = vadd.s32 %v621, %v619
      %v623 = vrot.slane %v622, 4
      %vm624 = vcmp.lt.s32.totalorder %v622, %v623
      %v625 = vsel %vm624, %v622, %v623
      %v626 = vrot.slane %v625, 2
      %vm627 = vcmp.lt.s32.totalorder %v625, %v626
      %v628 = vsel %vm627, %v625, %v626
      %v629 = vrot.slane %v628, 1
      %vm630 = vcmp.lt.s32.totalorder %v628, %v629
      %v631 = vsel %vm630, %v628, %v629
      %s632 = vtos %v631
      %s633 = scalar_lea.vmem %s188, %s632
      %v634 = vld [vmem:[%s633] sm:$0x1]
      %635 = vst.msk [vmem:[%s196 + $0x5] sm:$0x1] %vm209, %v634
      %v636 = vstv %s632
      %vm637 = vcmp.eq.s32.totalorder %v207, %v636
      %v638 = vsel %vm637, 1, 0
      %v639 = vcvt.s32.f32 %v638
      %640 = vst [vmem:[#allocation3 + $0x5] sm:$0x1] %v639
      %642 = vset.pattern.permute.xlu0 0
      %643 = vperm.xlu0 %642, %v634
      %v644 = vpop.permute.xlu0 %643
      %v646 = vmul.f32 %v644, %v197
      %647 = vset.pattern.permute.xlu0 1
      %648 = vperm.xlu0 %647, %v634
      %v649 = vpop.permute.xlu0 %648
      %v651 = vmul.f32 %v649, %v226
      %v652 = vadd.f32 %v646, %v651
      %653 = vset.pattern.permute.xlu0 2
      %654 = vperm.xlu0 %653, %v634
      %v655 = vpop.permute.xlu0 %654
      %v657 = vmul.f32 %v655, %v234
      %v658 = vadd.f32 %v652, %v657
      %v659 = vmul.f32 %v634, %v634
      %661 = vrot.lane.b32.xlu0 %v659, 127
      %v662 = vpop.permute.xlu0 %661
      %v664 = vadd.f32 %v659, %v662
      %665 = vrot.lane.b32.xlu0 %v659, 126
      %v666 = vpop.permute.xlu0 %665
      %v668 = vadd.f32 %v664, %v666
      %v669 = vmul.f32 %v658, 2.0
      %v670 = vsub.f32 %v205, %v669
      %672 = vset.pattern.permute.xlu0 0
      %673 = vperm.xlu0 %672, %v668
      %v674 = vpop.permute.xlu0 %673
      %v676 = vadd.f32 %v670, %v674
      %677 = vst [vmem:[#allocation2 + $0x5] sm:$0x1] %v676
      %v678 = vmin.f32 %v594, %v676
      %v679 = vsel %vm258, %v678, -inf
      %680 = vmax.xlane.f32.xlu0 %v679
      %v681 = vpop.xlane.xlu0 %680
      %v682 = vrot.slane %v681, 4
      %v683 = vmax.f32 %v681, %v682
      %v684 = vrot.slane %v683, 2
      %v685 = vmax.f32 %v683, %v684
      %v686 = vrot.slane %v685, 1
      %v687 = vmax.f32 %v685, %v686
      %s688 = vtos %v687
      %v689 = vstv %s688
      %vm690 = vcmp.eq.f32.partialorder %v678, %v689
      %v691 = vsel %vm690, %v207, 128
      %v692 = vsel %vm258, %v691, 2147483647
      %v693 = vand.u32 %v692, 65535
      %v694 = vshra.s32 %v692, 16
      %v695 = vcvt.s32.f32 %v693
      %v696 = vcvt.s32.f32 %v694
      %697 = vmin.xlane.f32.xlu0 %v696
      %v698 = vpop.xlane.xlu0 %697
      %vm699 = vcmp.eq.f32.partialorder %v696, %v698
      %v700 = vsel %vm699, %v695, inf
      %701 = vmin.xlane.f32.xlu0 %v700
      %v702 = vpop.xlane.xlu0 %701
      %v703 = vcvt.f32.s32 %v702
      %v704 = vcvt.f32.s32 %v698
      %v705 = vshll.u32 %v704, 16
      %v706 = vadd.s32 %v705, %v703
      %v707 = vrot.slane %v706, 4
      %vm708 = vcmp.lt.s32.totalorder %v706, %v707
      %v709 = vsel %vm708, %v706, %v707
      %v710 = vrot.slane %v709, 2
      %vm711 = vcmp.lt.s32.totalorder %v709, %v710
      %v712 = vsel %vm711, %v709, %v710
      %v713 = vrot.slane %v712, 1
      %vm714 = vcmp.lt.s32.totalorder %v712, %v713
      %v715 = vsel %vm714, %v712, %v713
      %s716 = vtos %v715
      %s717 = scalar_lea.vmem %s188, %s716
      %v718 = vld [vmem:[%s717] sm:$0x1]
      %719 = vst.msk [vmem:[%s196 + $0x6] sm:$0x1] %vm209, %v718
      %v720 = vstv %s716
      %vm721 = vcmp.eq.s32.totalorder %v207, %v720
      %v722 = vsel %vm721, 1, 0
      %v723 = vcvt.s32.f32 %v722
      %724 = vst [vmem:[#allocation3 + $0x6] sm:$0x1] %v723
      %726 = vset.pattern.permute.xlu0 0
      %727 = vperm.xlu0 %726, %v718
      %v728 = vpop.permute.xlu0 %727
      %v730 = vmul.f32 %v728, %v197
      %731 = vset.pattern.permute.xlu0 1
      %732 = vperm.xlu0 %731, %v718
      %v733 = vpop.permute.xlu0 %732
      %v735 = vmul.f32 %v733, %v226
      %v736 = vadd.f32 %v730, %v735
      %737 = vset.pattern.permute.xlu0 2
      %738 = vperm.xlu0 %737, %v718
      %v739 = vpop.permute.xlu0 %738
      %v741 = vmul.f32 %v739, %v234
      %v742 = vadd.f32 %v736, %v741
      %v743 = vmul.f32 %v718, %v718
      %745 = vrot.lane.b32.xlu0 %v743, 127
      %v746 = vpop.permute.xlu0 %745
      %v748 = vadd.f32 %v743, %v746
      %749 = vrot.lane.b32.xlu0 %v743, 126
      %v750 = vpop.permute.xlu0 %749
      %v752 = vadd.f32 %v748, %v750
      %v753 = vmul.f32 %v742, 2.0
      %v754 = vsub.f32 %v205, %v753
      %756 = vset.pattern.permute.xlu0 0
      %757 = vperm.xlu0 %756, %v752
      %v758 = vpop.permute.xlu0 %757
      %v760 = vadd.f32 %v754, %v758
      %761 = vst [vmem:[#allocation2 + $0x6] sm:$0x1] %v760
      %v762 = vmin.f32 %v678, %v760
      %v763 = vsel %vm258, %v762, -inf
      %764 = vmax.xlane.f32.xlu0 %v763
      %v765 = vpop.xlane.xlu0 %764
      %v766 = vrot.slane %v765, 4
      %v767 = vmax.f32 %v765, %v766
      %v768 = vrot.slane %v767, 2
      %v769 = vmax.f32 %v767, %v768
      %v770 = vrot.slane %v769, 1
      %v771 = vmax.f32 %v769, %v770
      %s772 = vtos %v771
      %v773 = vstv %s772
      %vm774 = vcmp.eq.f32.partialorder %v762, %v773
      %v775 = vsel %vm774, %v207, 128
      %v776 = vsel %vm258, %v775, 2147483647
      %v777 = vand.u32 %v776, 65535
      %v778 = vshra.s32 %v776, 16
      %v779 = vcvt.s32.f32 %v777
      %v780 = vcvt.s32.f32 %v778
      %781 = vmin.xlane.f32.xlu0 %v780
      %v782 = vpop.xlane.xlu0 %781
      %vm783 = vcmp.eq.f32.partialorder %v780, %v782
      %v784 = vsel %vm783, %v779, inf
      %785 = vmin.xlane.f32.xlu0 %v784
      %v786 = vpop.xlane.xlu0 %785
      %v787 = vcvt.f32.s32 %v786
      %v788 = vcvt.f32.s32 %v782
      %v789 = vshll.u32 %v788, 16
      %v790 = vadd.s32 %v789, %v787
      %v791 = vrot.slane %v790, 4
      %vm792 = vcmp.lt.s32.totalorder %v790, %v791
      %v793 = vsel %vm792, %v790, %v791
      %v794 = vrot.slane %v793, 2
      %vm795 = vcmp.lt.s32.totalorder %v793, %v794
      %v796 = vsel %vm795, %v793, %v794
      %v797 = vrot.slane %v796, 1
      %vm798 = vcmp.lt.s32.totalorder %v796, %v797
      %v799 = vsel %vm798, %v796, %v797
      %s800 = vtos %v799
      %s801 = scalar_lea.vmem %s188, %s800
      %v802 = vld [vmem:[%s801] sm:$0x1]
      %803 = vst.msk [vmem:[%s196 + $0x7] sm:$0x1] %vm209, %v802
      %v804 = vstv %s800
      %vm805 = vcmp.eq.s32.totalorder %v207, %v804
      %v806 = vsel %vm805, 1, 0
      %v807 = vcvt.s32.f32 %v806
      %808 = vst [vmem:[#allocation3 + $0x7] sm:$0x1] %v807
      %810 = vset.pattern.permute.xlu0 0
      %811 = vperm.xlu0 %810, %v802
      %v812 = vpop.permute.xlu0 %811
      %v814 = vmul.f32 %v812, %v197
      %815 = vset.pattern.permute.xlu0 1
      %816 = vperm.xlu0 %815, %v802
      %v817 = vpop.permute.xlu0 %816
      %v819 = vmul.f32 %v817, %v226
      %v820 = vadd.f32 %v814, %v819
      %821 = vset.pattern.permute.xlu0 2
      %822 = vperm.xlu0 %821, %v802
      %v823 = vpop.permute.xlu0 %822
      %v825 = vmul.f32 %v823, %v234
      %v826 = vadd.f32 %v820, %v825
      %v827 = vmul.f32 %v802, %v802
      %829 = vrot.lane.b32.xlu0 %v827, 127
      %v830 = vpop.permute.xlu0 %829
      %v832 = vadd.f32 %v827, %v830
      %833 = vrot.lane.b32.xlu0 %v827, 126
      %v834 = vpop.permute.xlu0 %833
      %v836 = vadd.f32 %v832, %v834
      %v837 = vmul.f32 %v826, 2.0
      %v838 = vsub.f32 %v205, %v837
      %840 = vset.pattern.permute.xlu0 0
      %841 = vperm.xlu0 %840, %v836
      %v842 = vpop.permute.xlu0 %841
      %v844 = vadd.f32 %v838, %v842
      %845 = vst [vmem:[#allocation2 + $0x7] sm:$0x1] %v844
      %v846 = vld [vmem:[#allocation3] sm:$0xff]
      %v847 = vld [vmem:[#allocation2] sm:$0xff]
      %848 = vmin.xlane.f32.xlu0 %v847
      %v849 = vpop.xlane.xlu0 %848
      %vm850 = vcmp.eq.f32.partialorder %v847, %v849
      %v851 = vsel %vm850, %v207, 128
      %v852 = vand.u32 %v851, 65535
      %v853 = vshra.s32 %v851, 16
      %v854 = vcvt.s32.f32 %v852
      %v855 = vcvt.s32.f32 %v853
      %856 = vmin.xlane.f32.xlu0 %v855
      %v857 = vpop.xlane.xlu0 %856
      %vm858 = vcmp.eq.f32.partialorder %v855, %v857
      %v859 = vsel %vm858, %v854, inf
      %860 = vmin.xlane.f32.xlu0 %v859
      %v861 = vpop.xlane.xlu0 %860
      %v862 = vcvt.f32.s32 %v861
      %v863 = vcvt.f32.s32 %v857
      %v864 = vshll.u32 %v863, 16
      %v865 = vadd.s32 %v864, %v862
      %vm866 = vcmp.eq.s32.totalorder %v207, %v865
      %v867 = vsel %vm866, 1, 0
      %v868 = vcvt.s32.f32 %v867
      %v869 = vsub.f32 %v868, %v846
      %870 = vst [vmem:[#allocation4] sm:$0xff] %v869
      %v871 = vsel %vm866, 1e+10, %v847
      %872 = vst [vmem:[#allocation2] sm:$0xff] %v871
      %v873 = vld [vmem:[#allocation2] sm:$0xff]
      %874 = vmin.xlane.f32.xlu0 %v873
      %v875 = vpop.xlane.xlu0 %874
      %vm876 = vcmp.eq.f32.partialorder %v873, %v875
      %v877 = vsel %vm876, %v207, 128
      %v878 = vand.u32 %v877, 65535
      %v879 = vshra.s32 %v877, 16
      %v880 = vcvt.s32.f32 %v878
      %v881 = vcvt.s32.f32 %v879
      %882 = vmin.xlane.f32.xlu0 %v881
      %v883 = vpop.xlane.xlu0 %882
      %vm884 = vcmp.eq.f32.partialorder %v881, %v883
      %v885 = vsel %vm884, %v880, inf
      %886 = vmin.xlane.f32.xlu0 %v885
      %v887 = vpop.xlane.xlu0 %886
      %v888 = vcvt.f32.s32 %v887
      %v889 = vcvt.f32.s32 %v883
      %v890 = vshll.u32 %v889, 16
      %v891 = vadd.s32 %v890, %v888
      %vm892 = vcmp.eq.s32.totalorder %v207, %v891
      %v893 = vsel %vm892, 1, 0
      %v894 = vcvt.s32.f32 %v893
      %v895 = vsub.f32 %v894, %v846
      %896 = vst [vmem:[#allocation4 + $0x8] sm:$0xff] %v895
      %v897 = vsel %vm892, 1e+10, %v873
      %898 = vst [vmem:[#allocation2] sm:$0xff] %v897
      %v899 = vld [vmem:[#allocation2] sm:$0xff]
      %900 = vmin.xlane.f32.xlu0 %v899
      %v901 = vpop.xlane.xlu0 %900
      %vm902 = vcmp.eq.f32.partialorder %v899, %v901
      %v903 = vsel %vm902, %v207, 128
      %v904 = vand.u32 %v903, 65535
      %v905 = vshra.s32 %v903, 16
      %v906 = vcvt.s32.f32 %v904
      %v907 = vcvt.s32.f32 %v905
      %908 = vmin.xlane.f32.xlu0 %v907
      %v909 = vpop.xlane.xlu0 %908
      %vm910 = vcmp.eq.f32.partialorder %v907, %v909
      %v911 = vsel %vm910, %v906, inf
      %912 = vmin.xlane.f32.xlu0 %v911
      %v913 = vpop.xlane.xlu0 %912
      %v914 = vcvt.f32.s32 %v913
      %v915 = vcvt.f32.s32 %v909
      %v916 = vshll.u32 %v915, 16
      %v917 = vadd.s32 %v916, %v914
      %vm918 = vcmp.eq.s32.totalorder %v207, %v917
      %v919 = vsel %vm918, 1, 0
      %v920 = vcvt.s32.f32 %v919
      %v921 = vsub.f32 %v920, %v846
      %922 = vst [vmem:[#allocation4 + $0x10] sm:$0xff] %v921
      %v923 = vsel %vm918, 1e+10, %v899
      %924 = vst [vmem:[#allocation2] sm:$0xff] %v923
      %v925 = vld [vmem:[#allocation2] sm:$0xff]
      %926 = vmin.xlane.f32.xlu0 %v925
      %v927 = vpop.xlane.xlu0 %926
      %vm928 = vcmp.eq.f32.partialorder %v925, %v927
      %v929 = vsel %vm928, %v207, 128
      %v930 = vand.u32 %v929, 65535
      %v931 = vshra.s32 %v929, 16
      %v932 = vcvt.s32.f32 %v930
      %v933 = vcvt.s32.f32 %v931
      %934 = vmin.xlane.f32.xlu0 %v933
      %v935 = vpop.xlane.xlu0 %934
      %vm936 = vcmp.eq.f32.partialorder %v933, %v935
      %v937 = vsel %vm936, %v932, inf
      %938 = vmin.xlane.f32.xlu0 %v937
      %v939 = vpop.xlane.xlu0 %938
      %v940 = vcvt.f32.s32 %v939
      %v941 = vcvt.f32.s32 %v935
      %v942 = vshll.u32 %v941, 16
      %v943 = vadd.s32 %v942, %v940
      %vm944 = vcmp.eq.s32.totalorder %v207, %v943
      %v945 = vsel %vm944, 1, 0
      %v946 = vcvt.s32.f32 %v945
      %v947 = vsub.f32 %v946, %v846
      %948 = vst [vmem:[#allocation4 + $0x18] sm:$0xff] %v947
      %v949 = vsel %vm944, 1e+10, %v925
      %950 = vst [vmem:[#allocation2] sm:$0xff] %v949
      %v951 = vld [vmem:[#allocation2] sm:$0xff]
      %952 = vmin.xlane.f32.xlu0 %v951
      %v953 = vpop.xlane.xlu0 %952
      %vm954 = vcmp.eq.f32.partialorder %v951, %v953
      %v955 = vsel %vm954, %v207, 128
      %v956 = vand.u32 %v955, 65535
      %v957 = vshra.s32 %v955, 16
      %v958 = vcvt.s32.f32 %v956
      %v959 = vcvt.s32.f32 %v957
      %960 = vmin.xlane.f32.xlu0 %v959
      %v961 = vpop.xlane.xlu0 %960
      %vm962 = vcmp.eq.f32.partialorder %v959, %v961
      %v963 = vsel %vm962, %v958, inf
      %964 = vmin.xlane.f32.xlu0 %v963
      %v965 = vpop.xlane.xlu0 %964
      %v966 = vcvt.f32.s32 %v965
      %v967 = vcvt.f32.s32 %v961
      %v968 = vshll.u32 %v967, 16
      %v969 = vadd.s32 %v968, %v966
      %vm970 = vcmp.eq.s32.totalorder %v207, %v969
      %v971 = vsel %vm970, 1, 0
      %v972 = vcvt.s32.f32 %v971
      %v973 = vsub.f32 %v972, %v846
      %974 = vst [vmem:[#allocation4 + $0x20] sm:$0xff] %v973
      %v975 = vsel %vm970, 1e+10, %v951
      %976 = vst [vmem:[#allocation2] sm:$0xff] %v975
      %v977 = vld [vmem:[#allocation2] sm:$0xff]
      %978 = vmin.xlane.f32.xlu0 %v977
      %v979 = vpop.xlane.xlu0 %978
      %vm980 = vcmp.eq.f32.partialorder %v977, %v979
      %v981 = vsel %vm980, %v207, 128
      %v982 = vand.u32 %v981, 65535
      %v983 = vshra.s32 %v981, 16
      %v984 = vcvt.s32.f32 %v982
      %v985 = vcvt.s32.f32 %v983
      %986 = vmin.xlane.f32.xlu0 %v985
      %v987 = vpop.xlane.xlu0 %986
      %vm988 = vcmp.eq.f32.partialorder %v985, %v987
      %v989 = vsel %vm988, %v984, inf
      %990 = vmin.xlane.f32.xlu0 %v989
      %v991 = vpop.xlane.xlu0 %990
      %v992 = vcvt.f32.s32 %v991
      %v993 = vcvt.f32.s32 %v987
      %v994 = vshll.u32 %v993, 16
      %v995 = vadd.s32 %v994, %v992
      %vm996 = vcmp.eq.s32.totalorder %v207, %v995
      %v997 = vsel %vm996, 1, 0
      %v998 = vcvt.s32.f32 %v997
      %v999 = vsub.f32 %v998, %v846
      %1000 = vst [vmem:[#allocation4 + $0x28] sm:$0xff] %v999
      %v1001 = vsel %vm996, 1e+10, %v977
      %1002 = vst [vmem:[#allocation2] sm:$0xff] %v1001
      %v1003 = vld [vmem:[#allocation2] sm:$0xff]
      %1004 = vmin.xlane.f32.xlu0 %v1003
      %v1005 = vpop.xlane.xlu0 %1004
      %vm1006 = vcmp.eq.f32.partialorder %v1003, %v1005
      %v1007 = vsel %vm1006, %v207, 128
      %v1008 = vand.u32 %v1007, 65535
      %v1009 = vshra.s32 %v1007, 16
      %v1010 = vcvt.s32.f32 %v1008
      %v1011 = vcvt.s32.f32 %v1009
      %1012 = vmin.xlane.f32.xlu0 %v1011
      %v1013 = vpop.xlane.xlu0 %1012
      %vm1014 = vcmp.eq.f32.partialorder %v1011, %v1013
      %v1015 = vsel %vm1014, %v1010, inf
      %1016 = vmin.xlane.f32.xlu0 %v1015
      %v1017 = vpop.xlane.xlu0 %1016
      %v1018 = vcvt.f32.s32 %v1017
      %v1019 = vcvt.f32.s32 %v1013
      %v1020 = vshll.u32 %v1019, 16
      %v1021 = vadd.s32 %v1020, %v1018
      %vm1022 = vcmp.eq.s32.totalorder %v207, %v1021
      %v1023 = vsel %vm1022, 1, 0
      %v1024 = vcvt.s32.f32 %v1023
      %v1025 = vsub.f32 %v1024, %v846
      %1026 = vst [vmem:[#allocation4 + $0x30] sm:$0xff] %v1025
      %v1027 = vsel %vm1022, 1e+10, %v1003
      %1028 = vst [vmem:[#allocation2] sm:$0xff] %v1027
      %v1029 = vld [vmem:[#allocation2] sm:$0xff]
      %1030 = vmin.xlane.f32.xlu0 %v1029
      %v1031 = vpop.xlane.xlu0 %1030
      %vm1032 = vcmp.eq.f32.partialorder %v1029, %v1031
      %v1033 = vsel %vm1032, %v207, 128
      %v1034 = vand.u32 %v1033, 65535
      %v1035 = vshra.s32 %v1033, 16
      %v1036 = vcvt.s32.f32 %v1034
      %v1037 = vcvt.s32.f32 %v1035
      %1038 = vmin.xlane.f32.xlu0 %v1037
      %v1039 = vpop.xlane.xlu0 %1038
      %vm1040 = vcmp.eq.f32.partialorder %v1037, %v1039
      %v1041 = vsel %vm1040, %v1036, inf
      %1042 = vmin.xlane.f32.xlu0 %v1041
      %v1043 = vpop.xlane.xlu0 %1042
      %v1044 = vcvt.f32.s32 %v1043
      %v1045 = vcvt.f32.s32 %v1039
      %v1046 = vshll.u32 %v1045, 16
      %v1047 = vadd.s32 %v1046, %v1044
      %vm1048 = vcmp.eq.s32.totalorder %v207, %v1047
      %v1049 = vsel %vm1048, 1, 0
      %v1050 = vcvt.s32.f32 %v1049
      %v1051 = vsub.f32 %v1050, %v846
      %1052 = vst [vmem:[#allocation4 + $0x38] sm:$0xff] %v1051
      %v1053 = vsel %vm1048, 1e+10, %v1029
      %1054 = vst [vmem:[#allocation2] sm:$0xff] %v1053
      %v1055 = vld [vmem:[#allocation2] sm:$0xff]
      %1056 = vmin.xlane.f32.xlu0 %v1055
      %v1057 = vpop.xlane.xlu0 %1056
      %vm1058 = vcmp.eq.f32.partialorder %v1055, %v1057
      %v1059 = vsel %vm1058, %v207, 128
      %v1060 = vand.u32 %v1059, 65535
      %v1061 = vshra.s32 %v1059, 16
      %v1062 = vcvt.s32.f32 %v1060
      %v1063 = vcvt.s32.f32 %v1061
      %1064 = vmin.xlane.f32.xlu0 %v1063
      %v1065 = vpop.xlane.xlu0 %1064
      %vm1066 = vcmp.eq.f32.partialorder %v1063, %v1065
      %v1067 = vsel %vm1066, %v1062, inf
      %1068 = vmin.xlane.f32.xlu0 %v1067
      %v1069 = vpop.xlane.xlu0 %1068
      %v1070 = vcvt.f32.s32 %v1069
      %v1071 = vcvt.f32.s32 %v1065
      %v1072 = vshll.u32 %v1071, 16
      %v1073 = vadd.s32 %v1072, %v1070
      %vm1074 = vcmp.eq.s32.totalorder %v207, %v1073
      %v1075 = vsel %vm1074, 1, 0
      %v1076 = vcvt.s32.f32 %v1075
      %v1077 = vsub.f32 %v1076, %v846
      %1078 = vst [vmem:[#allocation4 + $0x40] sm:$0xff] %v1077
      %v1079 = vsel %vm1074, 1e+10, %v1055
      %1080 = vst [vmem:[#allocation2] sm:$0xff] %v1079
      %v1081 = vld [vmem:[#allocation2] sm:$0xff]
      %1082 = vmin.xlane.f32.xlu0 %v1081
      %v1083 = vpop.xlane.xlu0 %1082
      %vm1084 = vcmp.eq.f32.partialorder %v1081, %v1083
      %v1085 = vsel %vm1084, %v207, 128
      %v1086 = vand.u32 %v1085, 65535
      %v1087 = vshra.s32 %v1085, 16
      %v1088 = vcvt.s32.f32 %v1086
      %v1089 = vcvt.s32.f32 %v1087
      %1090 = vmin.xlane.f32.xlu0 %v1089
      %v1091 = vpop.xlane.xlu0 %1090
      %vm1092 = vcmp.eq.f32.partialorder %v1089, %v1091
      %v1093 = vsel %vm1092, %v1088, inf
      %1094 = vmin.xlane.f32.xlu0 %v1093
      %v1095 = vpop.xlane.xlu0 %1094
      %v1096 = vcvt.f32.s32 %v1095
      %v1097 = vcvt.f32.s32 %v1091
      %v1098 = vshll.u32 %v1097, 16
      %v1099 = vadd.s32 %v1098, %v1096
      %vm1100 = vcmp.eq.s32.totalorder %v207, %v1099
      %v1101 = vsel %vm1100, 1, 0
      %v1102 = vcvt.s32.f32 %v1101
      %v1103 = vsub.f32 %v1102, %v846
      %1104 = vst [vmem:[#allocation4 + $0x48] sm:$0xff] %v1103
      %v1105 = vsel %vm1100, 1e+10, %v1081
      %1106 = vst [vmem:[#allocation2] sm:$0xff] %v1105
      %v1107 = vld [vmem:[#allocation2] sm:$0xff]
      %1108 = vmin.xlane.f32.xlu0 %v1107
      %v1109 = vpop.xlane.xlu0 %1108
      %vm1110 = vcmp.eq.f32.partialorder %v1107, %v1109
      %v1111 = vsel %vm1110, %v207, 128
      %v1112 = vand.u32 %v1111, 65535
      %v1113 = vshra.s32 %v1111, 16
      %v1114 = vcvt.s32.f32 %v1112
      %v1115 = vcvt.s32.f32 %v1113
      %1116 = vmin.xlane.f32.xlu0 %v1115
      %v1117 = vpop.xlane.xlu0 %1116
      %vm1118 = vcmp.eq.f32.partialorder %v1115, %v1117
      %v1119 = vsel %vm1118, %v1114, inf
      %1120 = vmin.xlane.f32.xlu0 %v1119
      %v1121 = vpop.xlane.xlu0 %1120
      %v1122 = vcvt.f32.s32 %v1121
      %v1123 = vcvt.f32.s32 %v1117
      %v1124 = vshll.u32 %v1123, 16
      %v1125 = vadd.s32 %v1124, %v1122
      %vm1126 = vcmp.eq.s32.totalorder %v207, %v1125
      %v1127 = vsel %vm1126, 1, 0
      %v1128 = vcvt.s32.f32 %v1127
      %v1129 = vsub.f32 %v1128, %v846
      %1130 = vst [vmem:[#allocation4 + $0x50] sm:$0xff] %v1129
      %v1131 = vsel %vm1126, 1e+10, %v1107
      %1132 = vst [vmem:[#allocation2] sm:$0xff] %v1131
      %v1133 = vld [vmem:[#allocation2] sm:$0xff]
      %1134 = vmin.xlane.f32.xlu0 %v1133
      %v1135 = vpop.xlane.xlu0 %1134
      %vm1136 = vcmp.eq.f32.partialorder %v1133, %v1135
      %v1137 = vsel %vm1136, %v207, 128
      %v1138 = vand.u32 %v1137, 65535
      %v1139 = vshra.s32 %v1137, 16
      %v1140 = vcvt.s32.f32 %v1138
      %v1141 = vcvt.s32.f32 %v1139
      %1142 = vmin.xlane.f32.xlu0 %v1141
      %v1143 = vpop.xlane.xlu0 %1142
      %vm1144 = vcmp.eq.f32.partialorder %v1141, %v1143
      %v1145 = vsel %vm1144, %v1140, inf
      %1146 = vmin.xlane.f32.xlu0 %v1145
      %v1147 = vpop.xlane.xlu0 %1146
      %v1148 = vcvt.f32.s32 %v1147
      %v1149 = vcvt.f32.s32 %v1143
      %v1150 = vshll.u32 %v1149, 16
      %v1151 = vadd.s32 %v1150, %v1148
      %vm1152 = vcmp.eq.s32.totalorder %v207, %v1151
      %v1153 = vsel %vm1152, 1, 0
      %v1154 = vcvt.s32.f32 %v1153
      %v1155 = vsub.f32 %v1154, %v846
      %1156 = vst [vmem:[#allocation4 + $0x58] sm:$0xff] %v1155
      %v1157 = vsel %vm1152, 1e+10, %v1133
      %1158 = vst [vmem:[#allocation2] sm:$0xff] %v1157
      %v1159 = vld [vmem:[#allocation2] sm:$0xff]
      %1160 = vmin.xlane.f32.xlu0 %v1159
      %v1161 = vpop.xlane.xlu0 %1160
      %vm1162 = vcmp.eq.f32.partialorder %v1159, %v1161
      %v1163 = vsel %vm1162, %v207, 128
      %v1164 = vand.u32 %v1163, 65535
      %v1165 = vshra.s32 %v1163, 16
      %v1166 = vcvt.s32.f32 %v1164
      %v1167 = vcvt.s32.f32 %v1165
      %1168 = vmin.xlane.f32.xlu0 %v1167
      %v1169 = vpop.xlane.xlu0 %1168
      %vm1170 = vcmp.eq.f32.partialorder %v1167, %v1169
      %v1171 = vsel %vm1170, %v1166, inf
      %1172 = vmin.xlane.f32.xlu0 %v1171
      %v1173 = vpop.xlane.xlu0 %1172
      %v1174 = vcvt.f32.s32 %v1173
      %v1175 = vcvt.f32.s32 %v1169
      %v1176 = vshll.u32 %v1175, 16
      %v1177 = vadd.s32 %v1176, %v1174
      %vm1178 = vcmp.eq.s32.totalorder %v207, %v1177
      %v1179 = vsel %vm1178, 1, 0
      %v1180 = vcvt.s32.f32 %v1179
      %v1181 = vsub.f32 %v1180, %v846
      %1182 = vst [vmem:[#allocation4 + $0x60] sm:$0xff] %v1181
      %v1183 = vsel %vm1178, 1e+10, %v1159
      %1184 = vst [vmem:[#allocation2] sm:$0xff] %v1183
      %v1185 = vld [vmem:[#allocation2] sm:$0xff]
      %1186 = vmin.xlane.f32.xlu0 %v1185
      %v1187 = vpop.xlane.xlu0 %1186
      %vm1188 = vcmp.eq.f32.partialorder %v1185, %v1187
      %v1189 = vsel %vm1188, %v207, 128
      %v1190 = vand.u32 %v1189, 65535
      %v1191 = vshra.s32 %v1189, 16
      %v1192 = vcvt.s32.f32 %v1190
      %v1193 = vcvt.s32.f32 %v1191
      %1194 = vmin.xlane.f32.xlu0 %v1193
      %v1195 = vpop.xlane.xlu0 %1194
      %vm1196 = vcmp.eq.f32.partialorder %v1193, %v1195
      %v1197 = vsel %vm1196, %v1192, inf
      %1198 = vmin.xlane.f32.xlu0 %v1197
      %v1199 = vpop.xlane.xlu0 %1198
      %v1200 = vcvt.f32.s32 %v1199
      %v1201 = vcvt.f32.s32 %v1195
      %v1202 = vshll.u32 %v1201, 16
      %v1203 = vadd.s32 %v1202, %v1200
      %vm1204 = vcmp.eq.s32.totalorder %v207, %v1203
      %v1205 = vsel %vm1204, 1, 0
      %v1206 = vcvt.s32.f32 %v1205
      %v1207 = vsub.f32 %v1206, %v846
      %1208 = vst [vmem:[#allocation4 + $0x68] sm:$0xff] %v1207
      %v1209 = vsel %vm1204, 1e+10, %v1185
      %1210 = vst [vmem:[#allocation2] sm:$0xff] %v1209
      %v1211 = vld [vmem:[#allocation2] sm:$0xff]
      %1212 = vmin.xlane.f32.xlu0 %v1211
      %v1213 = vpop.xlane.xlu0 %1212
      %vm1214 = vcmp.eq.f32.partialorder %v1211, %v1213
      %v1215 = vsel %vm1214, %v207, 128
      %v1216 = vand.u32 %v1215, 65535
      %v1217 = vshra.s32 %v1215, 16
      %v1218 = vcvt.s32.f32 %v1216
      %v1219 = vcvt.s32.f32 %v1217
      %1220 = vmin.xlane.f32.xlu0 %v1219
      %v1221 = vpop.xlane.xlu0 %1220
      %vm1222 = vcmp.eq.f32.partialorder %v1219, %v1221
      %v1223 = vsel %vm1222, %v1218, inf
      %1224 = vmin.xlane.f32.xlu0 %v1223
      %v1225 = vpop.xlane.xlu0 %1224
      %v1226 = vcvt.f32.s32 %v1225
      %v1227 = vcvt.f32.s32 %v1221
      %v1228 = vshll.u32 %v1227, 16
      %v1229 = vadd.s32 %v1228, %v1226
      %vm1230 = vcmp.eq.s32.totalorder %v207, %v1229
      %v1231 = vsel %vm1230, 1, 0
      %v1232 = vcvt.s32.f32 %v1231
      %v1233 = vsub.f32 %v1232, %v846
      %1234 = vst [vmem:[#allocation4 + $0x70] sm:$0xff] %v1233
      %v1235 = vsel %vm1230, 1e+10, %v1211
      %1236 = vst [vmem:[#allocation2] sm:$0xff] %v1235
      %v1237 = vld [vmem:[#allocation2] sm:$0xff]
      %1238 = vmin.xlane.f32.xlu0 %v1237
      %v1239 = vpop.xlane.xlu0 %1238
      %vm1240 = vcmp.eq.f32.partialorder %v1237, %v1239
      %v1241 = vsel %vm1240, %v207, 128
      %v1242 = vand.u32 %v1241, 65535
      %v1243 = vshra.s32 %v1241, 16
      %v1244 = vcvt.s32.f32 %v1242
      %v1245 = vcvt.s32.f32 %v1243
      %1246 = vmin.xlane.f32.xlu0 %v1245
      %v1247 = vpop.xlane.xlu0 %1246
      %vm1248 = vcmp.eq.f32.partialorder %v1245, %v1247
      %v1249 = vsel %vm1248, %v1244, inf
      %1250 = vmin.xlane.f32.xlu0 %v1249
      %v1251 = vpop.xlane.xlu0 %1250
      %v1252 = vcvt.f32.s32 %v1251
      %v1253 = vcvt.f32.s32 %v1247
      %v1254 = vshll.u32 %v1253, 16
      %v1255 = vadd.s32 %v1254, %v1252
      %vm1256 = vcmp.eq.s32.totalorder %v207, %v1255
      %v1257 = vsel %vm1256, 1, 0
      %v1258 = vcvt.s32.f32 %v1257
      %v1259 = vsub.f32 %v1258, %v846
      %1260 = vst [vmem:[#allocation4 + $0x78] sm:$0xff] %v1259
      %v1261 = vsel %vm1256, 1e+10, %v1237
      %1262 = vst [vmem:[#allocation2] sm:$0xff] %v1261
      %v1263 = vld [vmem:[#allocation4] sm:$0xff]
      %v1264 = vld [vmem:[#allocation4 + $0x8] sm:$0xff]
      %v1265 = vld [vmem:[#allocation4 + $0x10] sm:$0xff]
      %v1266 = vld [vmem:[#allocation4 + $0x18] sm:$0xff]
      %v1267 = vld [vmem:[#allocation4 + $0x20] sm:$0xff]
      %v1268 = vld [vmem:[#allocation4 + $0x28] sm:$0xff]
      %v1269 = vld [vmem:[#allocation4 + $0x30] sm:$0xff]
      %v1270 = vld [vmem:[#allocation4 + $0x38] sm:$0xff]
      %v1271 = vld [vmem:[#allocation4 + $0x40] sm:$0xff]
      %v1272 = vld [vmem:[#allocation4 + $0x48] sm:$0xff]
      %v1273 = vld [vmem:[#allocation4 + $0x50] sm:$0xff]
      %v1274 = vld [vmem:[#allocation4 + $0x58] sm:$0xff]
      %v1275 = vld [vmem:[#allocation4 + $0x60] sm:$0xff]
      %v1276 = vld [vmem:[#allocation4 + $0x68] sm:$0xff]
      %v1277 = vld [vmem:[#allocation4 + $0x70] sm:$0xff]
      %v1278 = vld [vmem:[#allocation4 + $0x78] sm:$0xff]
      %1279 = vmatprep.subr.mxu0 0.0
      %1280 = vmatpush1.xpose.msra.mxu0 %v1278
      %1281 = vmatprep.subr.mxu0 0.0
      %1282 = vmatpush1.xpose.msra.mxu0 %v1277
      %1283 = vmatprep.subr.mxu0 0.0
      %1284 = vmatpush1.xpose.msra.mxu0 %v1276
      %1285 = vmatprep.subr.mxu0 0.0
      %1286 = vmatpush1.xpose.msra.mxu0 %v1275
      %1287 = vmatprep.subr.mxu0 0.0
      %1288 = vmatpush1.xpose.msra.mxu0 %v1274
      %1289 = vmatprep.subr.mxu0 0.0
      %1290 = vmatpush1.xpose.msra.mxu0 %v1273
      %1291 = vmatprep.subr.mxu0 0.0
      %1292 = vmatpush1.xpose.msra.mxu0 %v1272
      %1293 = vmatprep.subr.mxu0 0.0
      %1294 = vmatpush1.xpose.msra.mxu0 %v1271
      %1295 = vmatprep.subr.mxu0 0.0
      %1296 = vmatpush1.xpose.msra.mxu0 %v1270
      %1297 = vmatprep.subr.mxu0 0.0
      %1298 = vmatpush1.xpose.msra.mxu0 %v1269
      %1299 = vmatprep.subr.mxu0 0.0
      %1300 = vmatpush1.xpose.msra.mxu0 %v1268
      %1301 = vmatprep.subr.mxu0 0.0
      %1302 = vmatpush1.xpose.msra.mxu0 %v1267
      %1303 = vmatprep.subr.mxu0 0.0
      %1304 = vmatpush1.xpose.msra.mxu0 %v1266
      %1305 = vmatprep.subr.mxu0 0.0
      %1306 = vmatpush1.xpose.msra.mxu0 %v1265
      %1307 = vmatprep.subr.mxu0 0.0
      %1308 = vmatpush1.xpose.msra.mxu0 %v1264
      %1309 = vmatprep.subr.mxu0 0.0
      %1310 = vmatpush1.xpose.msra.mxu0 %v1263
      %1311 = vmatprep.subr.mxu0 0.0
      %1312 = vmatpush2.xpose.msra.mxu0 0.0
      %1313 = vmatprep.subr.mxu0 0.0
      %1314 = vmatpush2.xpose.msra.mxu0 0.0
      %1315 = vmatprep.subr.mxu0 0.0
      %1316 = vmatpush2.xpose.msra.mxu0 0.0
      %1317 = vmatprep.subr.mxu0 0.0
      %1318 = vmatpush2.xpose.msra.mxu0 0.0
      %1319 = vmatprep.subr.mxu0 0.0
      %1320 = vmatpush2.xpose.msra.mxu0 0.0
      %1321 = vmatprep.subr.mxu0 0.0
      %1322 = vmatpush2.xpose.msra.mxu0 0.0
      %1323 = vmatprep.subr.mxu0 0.0
      %1324 = vmatpush2.xpose.msra.mxu0 0.0
      %1325 = vmatprep.subr.mxu0 0.0
      %1326 = vmatpush2.xpose.msra.mxu0 0.0
      %1327 = vmatprep.subr.mxu0 0.0
      %1328 = vmatpush2.xpose.msra.mxu0 0.0
      %1329 = vmatprep.subr.mxu0 0.0
      %1330 = vmatpush2.xpose.msra.mxu0 0.0
      %1331 = vmatprep.subr.mxu0 0.0
      %1332 = vmatpush2.xpose.msra.mxu0 0.0
      %1333 = vmatprep.subr.mxu0 0.0
      %1334 = vmatpush2.xpose.msra.mxu0 0.0
      %1335 = vmatprep.subr.mxu0 0.0
      %1336 = vmatpush2.xpose.msra.mxu0 0.0
      %1337 = vmatprep.subr.mxu0 0.0
      %1338 = vmatpush2.xpose.msra.mxu0 0.0
      %1339 = vmatprep.subr.mxu0 0.0
      %1340 = vmatpush2.xpose.msra.mxu0 0.0
      %1341 = vmatprep.subr.mxu0 0.0
      %1342 = vmatpush2.xpose.msra.mxu0 0.0
      %1343 = vmatprep.mubr.f32.mxu0 0.0
      %1344 = vmatmul.mubr.f32.gmra.mxu0 %v197
      %v1345 = vpop.f32.mrf.mxu0
      %v1346 = vadd.f32 0.0, %v1345
      %v1347 = vpop.f32.mrf.mxu0
      %1348 = vdwg.mxu0
      %1349 = vst [vmem:[%s192] sm:$0x7] %v1346
      %p1350 = scmp.lt.s32.totalorder %s15, 1
      %s1351 = scalar_select %p1350, %s15, 1
      %s1352 = smul.addr %s1351, 4
      %s1353 = scalar_lea.vmem %s2, %s1352
      %p1354 = scmp.lt.s32.totalorder %s15, 1
      %s1355 = scalar_select %p1354, %s15, 1
      %s1356 = smul.addr %s1355, 8
      %s1357 = scalar_lea.vmem %s3, %s1356
      // Predicated region
      $region29: #{tpu_custom_call.1} parent=27 // pred_check
        %p1358 = pneg %p85
      $region30: #{tpu_custom_call.1} parent=27 // pred_check_branch
        %1360 = sbr.rel (%p1358) target = $region32
      $region31: #{tpu_custom_call.1} parent=27 // pred_region
        _
      $region32: #{tpu_custom_call.1} parent=27 // pred_fallthru
        _
      // Predicated region
      $region33: #{tpu_custom_call.1} parent=27 // pred_check
        %p1361 = pneg %p111
      $region34: #{tpu_custom_call.1} parent=27 // pred_check_branch
        %1363 = sbr.rel (%p1361) target = $region36
      $region35: #{tpu_custom_call.1} parent=27 // pred_region
        _
      $region36: #{tpu_custom_call.1} parent=27 // pred_fallthru
        _
    $region28: #{tpu_custom_call.1} parent=5 // pred_fallthru
      _
    %p1364 = scmp.le.s32.totalorder 2, %s10
    // Predicated region
    $region37: #{tpu_custom_call.1} parent=5 // pred_check
      %p1365 = pneg %p1364
    $region38: #{tpu_custom_call.1} parent=5 // pred_check_branch
      %1367 = sbr.rel (%p1365) target = $region40
    $region39: #{tpu_custom_call.1} parent=5 // pred_region
      %s1368 = ssub.s32 %s10, 2
      // Predicated region
      $region41: #{tpu_custom_call.1} parent=39 // pred_check
        %p1369 = pneg %p91
      $region42: #{tpu_custom_call.1} parent=39 // pred_check_branch
        %1371 = sbr.rel (%p1369) target = $region44
      $region43: #{tpu_custom_call.1} parent=39 // pred_region
        %p1372 = scmp.lt.s32.totalorder %s16, 1
        %s1373 = scalar_select %p1372, %s16, 1
        %s1374 = smul.addr %s1373, 4
        %s1375 = scalar_lea.vmem %s2, %s1374
      $region44: #{tpu_custom_call.1} parent=39 // pred_fallthru
        _
      // Predicated region
      $region45: #{tpu_custom_call.1} parent=39 // pred_check
        %p1376 = pneg %p117
      $region46: #{tpu_custom_call.1} parent=39 // pred_check_branch
        %1378 = sbr.rel (%p1376) target = $region48
      $region47: #{tpu_custom_call.1} parent=39 // pred_region
        %p1379 = scmp.lt.s32.totalorder %s16, 1
        %s1380 = scalar_select %p1379, %s16, 1
        %s1381 = smul.addr %s1380, 8
        %s1382 = scalar_lea.vmem %s3, %s1381
      $region48: #{tpu_custom_call.1} parent=39 // pred_fallthru
        _
    $region40: #{tpu_custom_call.1} parent=5 // pred_fallthru
      _
  $region6: #{tpu_custom_call.1} parent=0 // loop_footer
    %s14 = sadd.s32 1, %s10
  $region7: #{tpu_custom_call.1} parent=0 // loop_footer_branch
    %9 = sbr.rel target = $region3
  $region8: #{tpu_custom_call.1} parent=0 // loop_exit
    _

</llo_original>
